<compile_context>
chip_gen: v5e
topology: v5e:2x2
jax: 0.10.0
libtpu: 0.0.40
codegen_flags: <defaults>
</compile_context>

<pallas_src>
import jax
import jax.numpy as jnp
from jax.experimental import pallas as pl
from jax.experimental.pallas import tpu as pltpu


# -----------------------------------------------------------------------------
# Pallas kernel: PillarFeatureNet for one lane-dense tile of pillars.
# -----------------------------------------------------------------------------
def _pfn_kernel(feats_ref, aux_ref, w_ref, wxyz_ref, bias_ref, out_ref, x_ref):
    """
    feats_ref : (P, Cin, T) f32  point features, pillar axis on lanes
    aux_ref   : (4, T)      f32  rows = [cx, cy, cz, num_points]
    w_ref     : (Cout, K)   f32  fused weight, K = (Cin-3)+3+3, BN scale folded,
                                 f_center columns also absorb the raw-xyz columns
    wxyz_ref  : (Cout, 3)   f32  raw-xyz weight columns (BN-scaled) for the exact
                                 per-pillar center correction
    bias_ref  : (Cout, 1)   f32  folded eval-mode BN bias
    out_ref   : (Cout, T)   f32  pillar features (lane-dense)
    x_ref     : (K, T)      f32  VMEM scratch: per-point fused matmul RHS
    """
    p_max, cin, _ = feats_ref.shape
    cin_rest = cin - 3

    center = aux_ref[0:3, :]                       # (3, T)
    sizes = aux_ref[3:4, :]                        # (1, T)

    # Mean of xyz over valid points.  Padded point rows are zero (voxelizer
    # contract), so a plain sum over the outer point axis is exact.
    # TODO(synk): add a pl.debug_check for the zero-padding contract under
    # interpret mode; violating it silently corrupts points_mean.
    xyz_sum = feats_ref[0, 0:3, :]
    for p in range(1, p_max):
        xyz_sum = xyz_sum + feats_ref[p, 0:3, :]
    mean = xyz_sum / jnp.maximum(sizes, 1.0)       # (3, T)

    # Per-pillar correction W_xyz^T @ center, computed exactly in f32 on the VPU
    # so absolute (tens-of-meters) coordinates never hit the MXU input path.
    wxyz = wxyz_ref[...]                           # (Cout, 3)
    corr = (wxyz[:, 0:1] * center[0:1, :]
            + wxyz[:, 1:2] * center[1:2, :]
            + wxyz[:, 2:3] * center[2:3, :])       # (Cout, T)

    w = w_ref[...]                                 # (Cout, K)
    bias = bias_ref[...]                           # (Cout, 1)

    acc = None
    for p in range(p_max):                         # unrolled; P is small & static
        fp = feats_ref[p]                          # (Cin, T)
        xyz_p = fp[0:3, :]
        valid = (sizes >= float(p + 1)).astype(jnp.float32)        # (1, T)

        # Assemble the fused RHS (single MXU dot per point slice).
        if cin_rest > 0:
            x_ref[0:cin_rest, :] = fp[3:cin, :]    # extra feats (already 0 if padded)
        x_ref[cin_rest:cin_rest + 3, :] = (xyz_p - mean) * valid       # f_cluster
        x_ref[cin_rest + 3:cin_rest + 6, :] = (xyz_p - center) * valid  # f_center

        y = jnp.dot(w, x_ref[...], preferred_element_type=jnp.float32)  # (Cout, T)
        # fold-back of the raw-xyz term + folded BN bias, ReLU.
        y = jnp.maximum(y + corr * valid + bias, 0.0)
        # max over points = running elementwise max of (Cout, T) slabs.
        acc = y if acc is None else jnp.maximum(acc, y)

    out_ref[...] = acc


# -----------------------------------------------------------------------------
# Wrapper: layout prep, BN folding, pallas_call, NCHW scatter epilogue.
# -----------------------------------------------------------------------------
def pointpillars_encoder(feats, coords, sizes, params, *, batch_size, nx, ny,
                         voxel_size, pc_range, tile=512, bn_eps=1e-3):
    n, p, cin = feats.shape
    cout = params["weight"].shape[1]
    k = cin + 3                                    # rest(cin-3) + cluster(3) + center(3)

    vx, vy, vz = voxel_size
    xoff = vx / 2.0 + pc_range[0]
    yoff = vy / 2.0 + pc_range[1]
    zoff = vz / 2.0 + pc_range[2]

    # ---- tiling (lane constraint: tile multiple of 128) ---------------------
    tile = min(int(tile), -(-n // 128) * 128)
    tile = max(128, (tile // 128) * 128)
    n_pad = -(-n // tile) * tile
    pad = n_pad - n
    if pad:
        feats = jnp.pad(feats, ((0, pad), (0, 0), (0, 0)))

    # One-time, bandwidth-bound layout prep in XLA so every kernel operand is
    # lane-dense: (N, P, Cin) -> (P, Cin, N) puts the big pillar axis on lanes.
    feats_t = jnp.transpose(feats, (1, 2, 0)).astype(jnp.float32)

    # Lane-dense per-pillar aux: rows = [cx, cy, cz, num_points].
    cf = coords.astype(jnp.float32)
    aux = jnp.stack([cf[:, 3] * vx + xoff,
                     cf[:, 2] * vy + yoff,
                     cf[:, 1] * vz + zoff,
                     sizes.astype(jnp.float32)], axis=0)            # (4, N)
    if pad:
        aux = jnp.pad(aux, ((0, 0), (0, pad)))

    # ---- fold eval-mode BatchNorm1d into weight / bias -----------------------
    # TODO(synk): training-mode BN (batch statistics update) is not implemented.
    inv_std = 1.0 / jnp.sqrt(params["bn_var"] + bn_eps)
    scale = params["bn_gamma"] * inv_std                            # (Cout,)
    bias = params["bn_beta"] - params["bn_mean"] * scale            # (Cout,)
    ws = params["weight"].astype(jnp.float32) * scale[None, :]      # (Cin+6, Cout)

    # Reparameterize: W_xyz @ xyz == W_xyz @ f_center + W_xyz @ center, so the
    # raw-xyz rows are folded into the f_center rows and the per-pillar center
    # term is re-added in exact f32 inside the kernel (wxyz_t).
    w_xyz, w_rest = ws[0:3], ws[3:cin]
    w_cluster, w_center = ws[cin:cin + 3], ws[cin + 3:cin + 6]
    w_fused = jnp.concatenate([w_rest, w_cluster, w_center + w_xyz], axis=0)  # (K, Cout)
    w_t = w_fused.T                                                 # (Cout, K)
    wxyz_t = w_xyz.T                                                # (Cout, 3)
    bias_col = bias.reshape(cout, 1).astype(jnp.float32)

    pf_t = pl.pallas_call(
        _pfn_kernel,
        out_shape=jax.ShapeDtypeStruct((cout, n_pad), jnp.float32),
        grid_spec=pltpu.PrefetchScalarGridSpec(
            num_scalar_prefetch=0,
            grid=(n_pad // tile,),
            in_specs=[
                pl.BlockSpec((p, cin, tile), lambda i: (0, 0, i)),
                pl.BlockSpec((4, tile), lambda i: (0, i)),
                pl.BlockSpec((cout, k), lambda i: (0, 0)),
                pl.BlockSpec((cout, 3), lambda i: (0, 0)),
                pl.BlockSpec((cout, 1), lambda i: (0, 0)),
            ],
            out_specs=pl.BlockSpec((cout, tile), lambda i: (0, i)),
            scratch_shapes=[pltpu.VMEM((k, tile), jnp.float32)],
        ),
        compiler_params=pltpu.CompilerParams(
            dimension_semantics=("parallel",),       # independent tiles -> megacore
            vmem_limit_bytes=32 * 1024 * 1024),
    )(feats_t, aux, w_t, wxyz_t, bias_col)

    # ---- PointPillarsScatter (XLA): scatter straight into an NCHW-layout canvas.
    # Only the small (Cout, N) slab is transposed; the canvas is never transposed.
    # TODO(synk): scatter stays in XLA (.at[].set) — a Pallas version would need
    # per-row HBM DMA and is strictly slower here.  (Emitting NHWC for a
    # channels-last downstream conv would drop even the small transpose.)
    pf = pf_t[:, :n].T                                              # (N, Cout)
    b_idx = coords[:, 0].astype(jnp.int32)
    loc = (coords[:, 2] * nx + coords[:, 3]).astype(jnp.int32)
    canvas = jnp.zeros((batch_size, cout, ny * nx), jnp.float32)
    canvas = canvas.at[b_idx, :, loc].set(pf)
    return canvas.reshape(batch_size, cout, ny, nx)                 # NCHW


# -----------------------------------------------------------------------------
# Pure-JAX (f32) reference of the same forward, for verification.
# -----------------------------------------------------------------------------
def reference_forward(feats, coords, sizes, params, *, batch_size, nx, ny,
                      voxel_size, pc_range, bn_eps=1e-3):
    n, p, _ = feats.shape
    vx, vy, vz = voxel_size
    xoff = vx / 2.0 + pc_range[0]
    yoff = vy / 2.0 + pc_range[1]
    zoff = vz / 2.0 + pc_range[2]

    xyz = feats[:, :, :3]
    sizes_f = sizes.astype(jnp.float32)[:, None, None]
    points_mean = xyz.sum(axis=1, keepdims=True) / jnp.maximum(sizes_f, 1.0)
    f_cluster = xyz - points_mean

    cf = coords.astype(jnp.float32)
    f_center = jnp.stack([
        xyz[:, :, 0] - (cf[:, 3:4] * vx + xoff),
        xyz[:, :, 1] - (cf[:, 2:3] * vy + yoff),
        xyz[:, :, 2] - (cf[:, 1:2] * vz + zoff)], axis=-1)

    aug = jnp.concatenate([feats, f_cluster, f_center], axis=-1)
    mask = (jnp.arange(p)[None, :] < sizes[:, None]).astype(jnp.float32)[..., None]
    aug = aug * mask

    x = jnp.matmul(aug, params["weight"], precision=jax.lax.Precision.HIGHEST)
    inv_std = 1.0 / jnp.sqrt(params["bn_var"] + bn_eps)
    x = (x - params["bn_mean"]) * inv_std * params["bn_gamma"] + params["bn_beta"]
    x = jnp.maximum(x, 0.0)
    pf = x.max(axis=1)                                              # (N, Cout)

    canvas = jnp.zeros((batch_size, ny * nx, pf.shape[1]), jnp.float32)
    flat = coords[:, 2] * nx + coords[:, 3]
    canvas = canvas.at[coords[:, 0], flat].set(pf)
    return canvas.reshape(batch_size, ny, nx, -1).transpose(0, 3, 1, 2)


# -----------------------------------------------------------------------------
if __name__ == "__main__":
    B = 2             # batch_size
    NY, NX = 32, 32   # BEV grid
    N = 512           # number of non-empty pillars
    P = 8             # max points per pillar
    CIN = 4           # x, y, z, intensity
    COUT = 32         # PFN feature channels
    TILE = 128        # small tile for the toy problem (default 512 for real sizes)

    voxel_size = (0.25, 0.25, 4.0)
    pc_range = (0.0, 0.0, -2.0, 8.0, 8.0, 2.0)
    vx, vy, vz = voxel_size
    xoff = vx / 2.0 + pc_range[0]
    yoff = vy / 2.0 + pc_range[1]
    zoff = vz / 2.0 + pc_range[2]

    key = jax.random.PRNGKey(0)
    ks = jax.random.split(key, 9)

    # Unique pillar locations -> coords [b, z, y, x]
    flat_all = jax.random.permutation(ks[0], B * NY * NX)[:N]
    b = flat_all // (NY * NX)
    rem = flat_all % (NY * NX)
    yy = rem // NX
    xx = rem % NX
    coords = jnp.stack([b, jnp.zeros_like(b), yy, xx], axis=1).astype(jnp.int32)

    sizes = jax.random.randint(ks[1], (N,), 1, P + 1).astype(jnp.int32)

    # Points near each pillar center; padded point rows zeroed (voxelizer contract).
    centers = jnp.stack([xx.astype(jnp.float32) * vx + xoff,
                         yy.astype(jnp.float32) * vy + yoff,
                         jnp.full((N,), zoff, jnp.float32)], axis=-1)
    offsets = (jax.random.uniform(ks[2], (N, P, 3)) - 0.5) * jnp.array([vx, vy, vz])
    intensity = jax.random.uniform(ks[3], (N, P, 1))
    pts = jnp.concatenate([centers[:, None, :] + offsets, intensity], axis=-1)
    valid = (jnp.arange(P)[None, :] < sizes[:, None])[..., None]
    feats = jnp.where(valid, pts, 0.0).astype(jnp.float32)

    # Deterministic synthetic parameters.
    CAUG = CIN + 6
    params = {
        "weight": (0.1 * jax.random.normal(ks[4], (CAUG, COUT))).astype(jnp.float32),
        "bn_gamma": (1.0 + 0.1 * jax.random.normal(ks[5], (COUT,))).astype(jnp.float32),
        "bn_beta": (0.05 * jax.random.normal(ks[6], (COUT,))).astype(jnp.float32),
        "bn_mean": (0.1 * jax.random.normal(ks[7], (COUT,))).astype(jnp.float32),
        "bn_var": (0.5 + jax.random.uniform(ks[8], (COUT,))).astype(jnp.float32),
    }

    out = pointpillars_encoder(feats, coords, sizes, params,
                               batch_size=B, nx=NX, ny=NY,
                               voxel_size=voxel_size, pc_range=pc_range,
                               tile=TILE)
    out = jax.block_until_ready(out)

    ref = reference_forward(feats, coords, sizes, params,
                            batch_size=B, nx=NX, ny=NY,
                            voxel_size=voxel_size, pc_range=pc_range)

    assert out.shape == (B, COUT, NY, NX), out.shape
    # Tolerance covers the MXU's reduced-precision input path; all matmul
    # operands are small-magnitude offsets after the center reparameterization.
    err = float(jnp.max(jnp.abs(out - ref)))
    assert jnp.allclose(out, ref, atol=2e-2, rtol=2e-2), err

    print("KERNEL_OK")
</pallas_src>

<mosaic_0001>
module attributes {stable_mosaic.version = 11 : i64} {
  func.func @_pfn_kernel(%arg0: i32, %arg1: memref<8x4x128xf32, #tpu.memory_space<vmem>>, %arg2: memref<4x128xf32, #tpu.memory_space<vmem>>, %arg3: memref<32x7xf32, #tpu.memory_space<vmem>>, %arg4: memref<32x3xf32, #tpu.memory_space<vmem>>, %arg5: memref<32x1xf32, #tpu.memory_space<vmem>>, %arg6: memref<32x128xf32, #tpu.memory_space<vmem>>, %arg7: memref<7x128xf32, #tpu.memory_space<vmem>>) attributes {dimension_semantics = [#tpu.dimension_semantics<parallel>], iteration_bounds = array<i64: 4>, scalar_prefetch = 0 : i64, scratch_operands = 1 : i64, tpu.core_type = #tpu.core_type<tc>, window_params = [{transform_indices = @transform_0, window_bounds = array<i64: 8, 4, 128>}, {transform_indices = @transform_1, window_bounds = array<i64: 4, 128>}, {pipeline_mode = #tpu.pipeline_mode<synchronous>, transform_indices = @transform_2, window_bounds = array<i64: 32, 7>}, {pipeline_mode = #tpu.pipeline_mode<synchronous>, transform_indices = @transform_3, window_bounds = array<i64: 32, 3>}, {pipeline_mode = #tpu.pipeline_mode<synchronous>, transform_indices = @transform_4, window_bounds = array<i64: 32, 1>}, {transform_indices = @transform_5, window_bounds = array<i64: 32, 128>}]} {
    %c0 = arith.constant 0 : index
    %c0_0 = arith.constant 0 : index
    %0 = vector.load %arg2[%c0, %c0_0] : memref<4x128xf32, #tpu.memory_space<vmem>>, vector<3x128xf32>
    %c3 = arith.constant 3 : index
    %c0_1 = arith.constant 0 : index
    %1 = vector.load %arg2[%c3, %c0_1] : memref<4x128xf32, #tpu.memory_space<vmem>>, vector<1x128xf32>
    %c0_2 = arith.constant 0 : index
    %c0_3 = arith.constant 0 : index
    %c0_4 = arith.constant 0 : index
    %2 = vector.load %arg1[%c0_2, %c0_3, %c0_4] : memref<8x4x128xf32, #tpu.memory_space<vmem>>, vector<1x3x128xf32>
    %3 = vector.shape_cast %2 : vector<1x3x128xf32> to vector<3x128xf32>
    %c1 = arith.constant 1 : index
    %c0_5 = arith.constant 0 : index
    %c0_6 = arith.constant 0 : index
    %4 = vector.load %arg1[%c1, %c0_5, %c0_6] : memref<8x4x128xf32, #tpu.memory_space<vmem>>, vector<1x3x128xf32>
    %5 = vector.shape_cast %4 : vector<1x3x128xf32> to vector<3x128xf32>
    %6 = arith.addf %3, %5 : vector<3x128xf32>
    %c2 = arith.constant 2 : index
    %c0_7 = arith.constant 0 : index
    %c0_8 = arith.constant 0 : index
    %7 = vector.load %arg1[%c2, %c0_7, %c0_8] : memref<8x4x128xf32, #tpu.memory_space<vmem>>, vector<1x3x128xf32>
    %8 = vector.shape_cast %7 : vector<1x3x128xf32> to vector<3x128xf32>
    %9 = arith.addf %6, %8 : vector<3x128xf32>
    %c3_9 = arith.constant 3 : index
    %c0_10 = arith.constant 0 : index
    %c0_11 = arith.constant 0 : index
    %10 = vector.load %arg1[%c3_9, %c0_10, %c0_11] : memref<8x4x128xf32, #tpu.memory_space<vmem>>, vector<1x3x128xf32>
    %11 = vector.shape_cast %10 : vector<1x3x128xf32> to vector<3x128xf32>
    %12 = arith.addf %9, %11 : vector<3x128xf32>
    %c4 = arith.constant 4 : index
    %c0_12 = arith.constant 0 : index
    %c0_13 = arith.constant 0 : index
    %13 = vector.load %arg1[%c4, %c0_12, %c0_13] : memref<8x4x128xf32, #tpu.memory_space<vmem>>, vector<1x3x128xf32>
    %14 = vector.shape_cast %13 : vector<1x3x128xf32> to vector<3x128xf32>
    %15 = arith.addf %12, %14 : vector<3x128xf32>
    %c5 = arith.constant 5 : index
    %c0_14 = arith.constant 0 : index
    %c0_15 = arith.constant 0 : index
    %16 = vector.load %arg1[%c5, %c0_14, %c0_15] : memref<8x4x128xf32, #tpu.memory_space<vmem>>, vector<1x3x128xf32>
    %17 = vector.shape_cast %16 : vector<1x3x128xf32> to vector<3x128xf32>
    %18 = arith.addf %15, %17 : vector<3x128xf32>
    %c6 = arith.constant 6 : index
    %c0_16 = arith.constant 0 : index
    %c0_17 = arith.constant 0 : index
    %19 = vector.load %arg1[%c6, %c0_16, %c0_17] : memref<8x4x128xf32, #tpu.memory_space<vmem>>, vector<1x3x128xf32>
    %20 = vector.shape_cast %19 : vector<1x3x128xf32> to vector<3x128xf32>
    %21 = arith.addf %18, %20 : vector<3x128xf32>
    %c7 = arith.constant 7 : index
    %c0_18 = arith.constant 0 : index
    %c0_19 = arith.constant 0 : index
    %22 = vector.load %arg1[%c7, %c0_18, %c0_19] : memref<8x4x128xf32, #tpu.memory_space<vmem>>, vector<1x3x128xf32>
    %23 = vector.shape_cast %22 : vector<1x3x128xf32> to vector<3x128xf32>
    %24 = arith.addf %21, %23 : vector<3x128xf32>
    %cst = arith.constant 1.000000e+00 : f32
    %25 = vector.broadcast %cst : f32 to vector<1x128xf32>
    %26 = arith.maximumf %1, %25 : vector<1x128xf32>
    %27 = vector.broadcast %26 : vector<1x128xf32> to vector<3x128xf32>
    %28 = arith.divf %24, %27 : vector<3x128xf32>
    %c0_20 = arith.constant 0 : index
    %c0_21 = arith.constant 0 : index
    %29 = vector.load %arg4[%c0_20, %c0_21] : memref<32x3xf32, #tpu.memory_space<vmem>>, vector<32x3xf32>
    %30 = vector.extract_strided_slice %29 {offsets = [0, 0], sizes = [32, 1], strides = [1, 1]} : vector<32x3xf32> to vector<32x1xf32>
    %31 = vector.extract_strided_slice %0 {offsets = [0, 0], sizes = [1, 128], strides = [1, 1]} : vector<3x128xf32> to vector<1x128xf32>
    %32 = vector.broadcast %30 : vector<32x1xf32> to vector<32x128xf32>
    %33 = vector.broadcast %31 : vector<1x128xf32> to vector<32x128xf32>
    %34 = arith.mulf %32, %33 : vector<32x128xf32>
    %35 = vector.extract_strided_slice %29 {offsets = [0, 1], sizes = [32, 1], strides = [1, 1]} : vector<32x3xf32> to vector<32x1xf32>
    %36 = vector.extract_strided_slice %0 {offsets = [1, 0], sizes = [1, 128], strides = [1, 1]} : vector<3x128xf32> to vector<1x128xf32>
    %37 = vector.broadcast %35 : vector<32x1xf32> to vector<32x128xf32>
    %38 = vector.broadcast %36 : vector<1x128xf32> to vector<32x128xf32>
    %39 = arith.mulf %37, %38 : vector<32x128xf32>
    %40 = arith.addf %34, %39 : vector<32x128xf32>
    %41 = vector.extract_strided_slice %29 {offsets = [0, 2], sizes = [32, 1], strides = [1, 1]} : vector<32x3xf32> to vector<32x1xf32>
    %42 = vector.extract_strided_slice %0 {offsets = [2, 0], sizes = [1, 128], strides = [1, 1]} : vector<3x128xf32> to vector<1x128xf32>
    %43 = vector.broadcast %41 : vector<32x1xf32> to vector<32x128xf32>
    %44 = vector.broadcast %42 : vector<1x128xf32> to vector<32x128xf32>
    %45 = arith.mulf %43, %44 : vector<32x128xf32>
    %46 = arith.addf %40, %45 : vector<32x128xf32>
    %c0_22 = arith.constant 0 : index
    %c0_23 = arith.constant 0 : index
    %47 = vector.load %arg3[%c0_22, %c0_23] : memref<32x7xf32, #tpu.memory_space<vmem>>, vector<32x7xf32>
    %c0_24 = arith.constant 0 : index
    %c0_25 = arith.constant 0 : index
    %48 = vector.load %arg5[%c0_24, %c0_25] : memref<32x1xf32, #tpu.memory_space<vmem>>, vector<32x1xf32>
    %c0_26 = arith.constant 0 : index
    %c0_27 = arith.constant 0 : index
    %c0_28 = arith.constant 0 : index
    %49 = vector.load %arg1[%c0_26, %c0_27, %c0_28] : memref<8x4x128xf32, #tpu.memory_space<vmem>>, vector<1x4x128xf32>
    %50 = vector.shape_cast %49 : vector<1x4x128xf32> to vector<4x128xf32>
    %51 = vector.extract_strided_slice %50 {offsets = [0, 0], sizes = [3, 128], strides = [1, 1]} : vector<4x128xf32> to vector<3x128xf32>
    %cst_29 = arith.constant 1.000000e+00 : f32
    %52 = vector.broadcast %cst_29 : f32 to vector<1x128xf32>
    %53 = arith.cmpf oge, %1, %52 : vector<1x128xf32>
    %54 = arith.extui %53 : vector<1x128xi1> to vector<1x128xi32>
    %55 = arith.sitofp %54 : vector<1x128xi32> to vector<1x128xf32>
    %56 = vector.extract_strided_slice %50 {offsets = [3, 0], sizes = [1, 128], strides = [1, 1]} : vector<4x128xf32> to vector<1x128xf32>
    %c0_30 = arith.constant 0 : index
    %c0_31 = arith.constant 0 : index
    %57 = vector.load %arg7[%c0_30, %c0_31] : memref<7x128xf32, #tpu.memory_space<vmem>>, vector<1x128xf32>
    tpu.vector_store %arg7[%c0_30, %c0_31], %56 {strides = array<i32>} : memref<7x128xf32, #tpu.memory_space<vmem>>, vector<1x128xf32>,
    %58 = arith.subf %51, %28 : vector<3x128xf32>
    %59 = vector.broadcast %55 : vector<1x128xf32> to vector<3x128xf32>
    %60 = arith.mulf %58, %59 : vector<3x128xf32>
    %c1_32 = arith.constant 1 : index
    %c0_33 = arith.constant 0 : index
    %61 = vector.load %arg7[%c1_32, %c0_33] : memref<7x128xf32, #tpu.memory_space<vmem>>, vector<3x128xf32>
    tpu.vector_store %arg7[%c1_32, %c0_33], %60 {strides = array<i32>} : memref<7x128xf32, #tpu.memory_space<vmem>>, vector<3x128xf32>,
    %62 = arith.subf %51, %0 : vector<3x128xf32>
    %63 = vector.broadcast %55 : vector<1x128xf32> to vector<3x128xf32>
    %64 = arith.mulf %62, %63 : vector<3x128xf32>
    %c4_34 = arith.constant 4 : index
    %c0_35 = arith.constant 0 : index
    %65 = vector.load %arg7[%c4_34, %c0_35] : memref<7x128xf32, #tpu.memory_space<vmem>>, vector<3x128xf32>
    tpu.vector_store %arg7[%c4_34, %c0_35], %64 {strides = array<i32>} : memref<7x128xf32, #tpu.memory_space<vmem>>, vector<3x128xf32>,
    %c0_36 = arith.constant 0 : index
    %c0_37 = arith.constant 0 : index
    %66 = vector.load %arg7[%c0_36, %c0_37] : memref<7x128xf32, #tpu.memory_space<vmem>>, vector<7x128xf32>
    %cst_38 = arith.constant dense<0.000000e+00> : vector<32x128xf32>
    %67 = tpu.matmul %47, %66, %cst_38 {dimension_numbers = #tpu.dot_dimension_numbers<[1], [0], [0], [1], [0, 0, 1, 1], [], []>} : vector<32x7xf32>, vector<7x128xf32>, vector<32x128xf32> -> vector<32x128xf32>
    %68 = vector.broadcast %55 : vector<1x128xf32> to vector<32x128xf32>
    %69 = arith.mulf %46, %68 : vector<32x128xf32>
    %70 = arith.addf %67, %69 : vector<32x128xf32>
    %71 = vector.broadcast %48 : vector<32x1xf32> to vector<32x128xf32>
    %72 = arith.addf %70, %71 : vector<32x128xf32>
    %cst_39 = arith.constant 0.000000e+00 : f32
    %73 = vector.broadcast %cst_39 : f32 to vector<32x128xf32>
    %74 = arith.maximumf %72, %73 : vector<32x128xf32>
    %c1_40 = arith.constant 1 : index
    %c0_41 = arith.constant 0 : index
    %c0_42 = arith.constant 0 : index
    %75 = vector.load %arg1[%c1_40, %c0_41, %c0_42] : memref<8x4x128xf32, #tpu.memory_space<vmem>>, vector<1x4x128xf32>
    %76 = vector.shape_cast %75 : vector<1x4x128xf32> to vector<4x128xf32>
    %77 = vector.extract_strided_slice %76 {offsets = [0, 0], sizes = [3, 128], strides = [1, 1]} : vector<4x128xf32> to vector<3x128xf32>
    %cst_43 = arith.constant 2.000000e+00 : f32
    %78 = vector.broadcast %cst_43 : f32 to vector<1x128xf32>
    %79 = arith.cmpf oge, %1, %78 : vector<1x128xf32>
    %80 = arith.extui %79 : vector<1x128xi1> to vector<1x128xi32>
    %81 = arith.sitofp %80 : vector<1x128xi32> to vector<1x128xf32>
    %82 = vector.extract_strided_slice %76 {offsets = [3, 0], sizes = [1, 128], strides = [1, 1]} : vector<4x128xf32> to vector<1x128xf32>
    %c0_44 = arith.constant 0 : index
    %c0_45 = arith.constant 0 : index
    %83 = vector.load %arg7[%c0_44, %c0_45] : memref<7x128xf32, #tpu.memory_space<vmem>>, vector<1x128xf32>
    tpu.vector_store %arg7[%c0_44, %c0_45], %82 {strides = array<i32>} : memref<7x128xf32, #tpu.memory_space<vmem>>, vector<1x128xf32>,
    %84 = arith.subf %77, %28 : vector<3x128xf32>
    %85 = vector.broadcast %81 : vector<1x128xf32> to vector<3x128xf32>
    %86 = arith.mulf %84, %85 : vector<3x128xf32>
    %c1_46 = arith.constant 1 : index
    %c0_47 = arith.constant 0 : index
    %87 = vector.load %arg7[%c1_46, %c0_47] : memref<7x128xf32, #tpu.memory_space<vmem>>, vector<3x128xf32>
    tpu.vector_store %arg7[%c1_46, %c0_47], %86 {strides = array<i32>} : memref<7x128xf32, #tpu.memory_space<vmem>>, vector<3x128xf32>,
    %88 = arith.subf %77, %0 : vector<3x128xf32>
    %89 = vector.broadcast %81 : vector<1x128xf32> to vector<3x128xf32>
    %90 = arith.mulf %88, %89 : vector<3x128xf32>
    %c4_48 = arith.constant 4 : index
    %c0_49 = arith.constant 0 : index
    %91 = vector.load %arg7[%c4_48, %c0_49] : memref<7x128xf32, #tpu.memory_space<vmem>>, vector<3x128xf32>
    tpu.vector_store %arg7[%c4_48, %c0_49], %90 {strides = array<i32>} : memref<7x128xf32, #tpu.memory_space<vmem>>, vector<3x128xf32>,
    %c0_50 = arith.constant 0 : index
    %c0_51 = arith.constant 0 : index
    %92 = vector.load %arg7[%c0_50, %c0_51] : memref<7x128xf32, #tpu.memory_space<vmem>>, vector<7x128xf32>
    %cst_52 = arith.constant dense<0.000000e+00> : vector<32x128xf32>
    %93 = tpu.matmul %47, %92, %cst_52 {dimension_numbers = #tpu.dot_dimension_numbers<[1], [0], [0], [1], [0, 0, 1, 1], [], []>} : vector<32x7xf32>, vector<7x128xf32>, vector<32x128xf32> -> vector<32x128xf32>
    %94 = vector.broadcast %81 : vector<1x128xf32> to vector<32x128xf32>
    %95 = arith.mulf %46, %94 : vector<32x128xf32>
    %96 = arith.addf %93, %95 : vector<32x128xf32>
    %97 = vector.broadcast %48 : vector<32x1xf32> to vector<32x128xf32>
    %98 = arith.addf %96, %97 : vector<32x128xf32>
    %cst_53 = arith.constant 0.000000e+00 : f32
    %99 = vector.broadcast %cst_53 : f32 to vector<32x128xf32>
    %100 = arith.maximumf %98, %99 : vector<32x128xf32>
    %101 = arith.maximumf %74, %100 : vector<32x128xf32>
    %c2_54 = arith.constant 2 : index
    %c0_55 = arith.constant 0 : index
    %c0_56 = arith.constant 0 : index
    %102 = vector.load %arg1[%c2_54, %c0_55, %c0_56] : memref<8x4x128xf32, #tpu.memory_space<vmem>>, vector<1x4x128xf32>
    %103 = vector.shape_cast %102 : vector<1x4x128xf32> to vector<4x128xf32>
    %104 = vector.extract_strided_slice %103 {offsets = [0, 0], sizes = [3, 128], strides = [1, 1]} : vector<4x128xf32> to vector<3x128xf32>
    %cst_57 = arith.constant 3.000000e+00 : f32
    %105 = vector.broadcast %cst_57 : f32 to vector<1x128xf32>
    %106 = arith.cmpf oge, %1, %105 : vector<1x128xf32>
    %107 = arith.extui %106 : vector<1x128xi1> to vector<1x128xi32>
    %108 = arith.sitofp %107 : vector<1x128xi32> to vector<1x128xf32>
    %109 = vector.extract_strided_slice %103 {offsets = [3, 0], sizes = [1, 128], strides = [1, 1]} : vector<4x128xf32> to vector<1x128xf32>
    %c0_58 = arith.constant 0 : index
    %c0_59 = arith.constant 0 : index
    %110 = vector.load %arg7[%c0_58, %c0_59] : memref<7x128xf32, #tpu.memory_space<vmem>>, vector<1x128xf32>
    tpu.vector_store %arg7[%c0_58, %c0_59], %109 {strides = array<i32>} : memref<7x128xf32, #tpu.memory_space<vmem>>, vector<1x128xf32>,
    %111 = arith.subf %104, %28 : vector<3x128xf32>
    %112 = vector.broadcast %108 : vector<1x128xf32> to vector<3x128xf32>
    %113 = arith.mulf %111, %112 : vector<3x128xf32>
    %c1_60 = arith.constant 1 : index
    %c0_61 = arith.constant 0 : index
    %114 = vector.load %arg7[%c1_60, %c0_61] : memref<7x128xf32, #tpu.memory_space<vmem>>, vector<3x128xf32>
    tpu.vector_store %arg7[%c1_60, %c0_61], %113 {strides = array<i32>} : memref<7x128xf32, #tpu.memory_space<vmem>>, vector<3x128xf32>,
    %115 = arith.subf %104, %0 : vector<3x128xf32>
    %116 = vector.broadcast %108 : vector<1x128xf32> to vector<3x128xf32>
    %117 = arith.mulf %115, %116 : vector<3x128xf32>
    %c4_62 = arith.constant 4 : index
    %c0_63 = arith.constant 0 : index
    %118 = vector.load %arg7[%c4_62, %c0_63] : memref<7x128xf32, #tpu.memory_space<vmem>>, vector<3x128xf32>
    tpu.vector_store %arg7[%c4_62, %c0_63], %117 {strides = array<i32>} : memref<7x128xf32, #tpu.memory_space<vmem>>, vector<3x128xf32>,
    %c0_64 = arith.constant 0 : index
    %c0_65 = arith.constant 0 : index
    %119 = vector.load %arg7[%c0_64, %c0_65] : memref<7x128xf32, #tpu.memory_space<vmem>>, vector<7x128xf32>
    %cst_66 = arith.constant dense<0.000000e+00> : vector<32x128xf32>
    %120 = tpu.matmul %47, %119, %cst_66 {dimension_numbers = #tpu.dot_dimension_numbers<[1], [0], [0], [1], [0, 0, 1, 1], [], []>} : vector<32x7xf32>, vector<7x128xf32>, vector<32x128xf32> -> vector<32x128xf32>
    %121 = vector.broadcast %108 : vector<1x128xf32> to vector<32x128xf32>
    %122 = arith.mulf %46, %121 : vector<32x128xf32>
    %123 = arith.addf %120, %122 : vector<32x128xf32>
    %124 = vector.broadcast %48 : vector<32x1xf32> to vector<32x128xf32>
    %125 = arith.addf %123, %124 : vector<32x128xf32>
    %cst_67 = arith.constant 0.000000e+00 : f32
    %126 = vector.broadcast %cst_67 : f32 to vector<32x128xf32>
    %127 = arith.maximumf %125, %126 : vector<32x128xf32>
    %128 = arith.maximumf %101, %127 : vector<32x128xf32>
    %c3_68 = arith.constant 3 : index
    %c0_69 = arith.constant 0 : index
    %c0_70 = arith.constant 0 : index
    %129 = vector.load %arg1[%c3_68, %c0_69, %c0_70] : memref<8x4x128xf32, #tpu.memory_space<vmem>>, vector<1x4x128xf32>
    %130 = vector.shape_cast %129 : vector<1x4x128xf32> to vector<4x128xf32>
    %131 = vector.extract_strided_slice %130 {offsets = [0, 0], sizes = [3, 128], strides = [1, 1]} : vector<4x128xf32> to vector<3x128xf32>
    %cst_71 = arith.constant 4.000000e+00 : f32
    %132 = vector.broadcast %cst_71 : f32 to vector<1x128xf32>
    %133 = arith.cmpf oge, %1, %132 : vector<1x128xf32>
    %134 = arith.extui %133 : vector<1x128xi1> to vector<1x128xi32>
    %135 = arith.sitofp %134 : vector<1x128xi32> to vector<1x128xf32>
    %136 = vector.extract_strided_slice %130 {offsets = [3, 0], sizes = [1, 128], strides = [1, 1]} : vector<4x128xf32> to vector<1x128xf32>
    %c0_72 = arith.constant 0 : index
    %c0_73 = arith.constant 0 : index
    %137 = vector.load %arg7[%c0_72, %c0_73] : memref<7x128xf32, #tpu.memory_space<vmem>>, vector<1x128xf32>
    tpu.vector_store %arg7[%c0_72, %c0_73], %136 {strides = array<i32>} : memref<7x128xf32, #tpu.memory_space<vmem>>, vector<1x128xf32>,
    %138 = arith.subf %131, %28 : vector<3x128xf32>
    %139 = vector.broadcast %135 : vector<1x128xf32> to vector<3x128xf32>
    %140 = arith.mulf %138, %139 : vector<3x128xf32>
    %c1_74 = arith.constant 1 : index
    %c0_75 = arith.constant 0 : index
    %141 = vector.load %arg7[%c1_74, %c0_75] : memref<7x128xf32, #tpu.memory_space<vmem>>, vector<3x128xf32>
    tpu.vector_store %arg7[%c1_74, %c0_75], %140 {strides = array<i32>} : memref<7x128xf32, #tpu.memory_space<vmem>>, vector<3x128xf32>,
    %142 = arith.subf %131, %0 : vector<3x128xf32>
    %143 = vector.broadcast %135 : vector<1x128xf32> to vector<3x128xf32>
    %144 = arith.mulf %142, %143 : vector<3x128xf32>
    %c4_76 = arith.constant 4 : index
    %c0_77 = arith.constant 0 : index
    %145 = vector.load %arg7[%c4_76, %c0_77] : memref<7x128xf32, #tpu.memory_space<vmem>>, vector<3x128xf32>
    tpu.vector_store %arg7[%c4_76, %c0_77], %144 {strides = array<i32>} : memref<7x128xf32, #tpu.memory_space<vmem>>, vector<3x128xf32>,
    %c0_78 = arith.constant 0 : index
    %c0_79 = arith.constant 0 : index
    %146 = vector.load %arg7[%c0_78, %c0_79] : memref<7x128xf32, #tpu.memory_space<vmem>>, vector<7x128xf32>
    %cst_80 = arith.constant dense<0.000000e+00> : vector<32x128xf32>
    %147 = tpu.matmul %47, %146, %cst_80 {dimension_numbers = #tpu.dot_dimension_numbers<[1], [0], [0], [1], [0, 0, 1, 1], [], []>} : vector<32x7xf32>, vector<7x128xf32>, vector<32x128xf32> -> vector<32x128xf32>
    %148 = vector.broadcast %135 : vector<1x128xf32> to vector<32x128xf32>
    %149 = arith.mulf %46, %148 : vector<32x128xf32>
    %150 = arith.addf %147, %149 : vector<32x128xf32>
    %151 = vector.broadcast %48 : vector<32x1xf32> to vector<32x128xf32>
    %152 = arith.addf %150, %151 : vector<32x128xf32>
    %cst_81 = arith.constant 0.000000e+00 : f32
    %153 = vector.broadcast %cst_81 : f32 to vector<32x128xf32>
    %154 = arith.maximumf %152, %153 : vector<32x128xf32>
    %155 = arith.maximumf %128, %154 : vector<32x128xf32>
    %c4_82 = arith.constant 4 : index
    %c0_83 = arith.constant 0 : index
    %c0_84 = arith.constant 0 : index
    %156 = vector.load %arg1[%c4_82, %c0_83, %c0_84] : memref<8x4x128xf32, #tpu.memory_space<vmem>>, vector<1x4x128xf32>
    %157 = vector.shape_cast %156 : vector<1x4x128xf32> to vector<4x128xf32>
    %158 = vector.extract_strided_slice %157 {offsets = [0, 0], sizes = [3, 128], strides = [1, 1]} : vector<4x128xf32> to vector<3x128xf32>
    %cst_85 = arith.constant 5.000000e+00 : f32
    %159 = vector.broadcast %cst_85 : f32 to vector<1x128xf32>
    %160 = arith.cmpf oge, %1, %159 : vector<1x128xf32>
    %161 = arith.extui %160 : vector<1x128xi1> to vector<1x128xi32>
    %162 = arith.sitofp %161 : vector<1x128xi32> to vector<1x128xf32>
    %163 = vector.extract_strided_slice %157 {offsets = [3, 0], sizes = [1, 128], strides = [1, 1]} : vector<4x128xf32> to vector<1x128xf32>
    %c0_86 = arith.constant 0 : index
    %c0_87 = arith.constant 0 : index
    %164 = vector.load %arg7[%c0_86, %c0_87] : memref<7x128xf32, #tpu.memory_space<vmem>>, vector<1x128xf32>
    tpu.vector_store %arg7[%c0_86, %c0_87], %163 {strides = array<i32>} : memref<7x128xf32, #tpu.memory_space<vmem>>, vector<1x128xf32>,
    %165 = arith.subf %158, %28 : vector<3x128xf32>
    %166 = vector.broadcast %162 : vector<1x128xf32> to vector<3x128xf32>
    %167 = arith.mulf %165, %166 : vector<3x128xf32>
    %c1_88 = arith.constant 1 : index
    %c0_89 = arith.constant 0 : index
    %168 = vector.load %arg7[%c1_88, %c0_89] : memref<7x128xf32, #tpu.memory_space<vmem>>, vector<3x128xf32>
    tpu.vector_store %arg7[%c1_88, %c0_89], %167 {strides = array<i32>} : memref<7x128xf32, #tpu.memory_space<vmem>>, vector<3x128xf32>,
    %169 = arith.subf %158, %0 : vector<3x128xf32>
    %170 = vector.broadcast %162 : vector<1x128xf32> to vector<3x128xf32>
    %171 = arith.mulf %169, %170 : vector<3x128xf32>
    %c4_90 = arith.constant 4 : index
    %c0_91 = arith.constant 0 : index
    %172 = vector.load %arg7[%c4_90, %c0_91] : memref<7x128xf32, #tpu.memory_space<vmem>>, vector<3x128xf32>
    tpu.vector_store %arg7[%c4_90, %c0_91], %171 {strides = array<i32>} : memref<7x128xf32, #tpu.memory_space<vmem>>, vector<3x128xf32>,
    %c0_92 = arith.constant 0 : index
    %c0_93 = arith.constant 0 : index
    %173 = vector.load %arg7[%c0_92, %c0_93] : memref<7x128xf32, #tpu.memory_space<vmem>>, vector<7x128xf32>
    %cst_94 = arith.constant dense<0.000000e+00> : vector<32x128xf32>
    %174 = tpu.matmul %47, %173, %cst_94 {dimension_numbers = #tpu.dot_dimension_numbers<[1], [0], [0], [1], [0, 0, 1, 1], [], []>} : vector<32x7xf32>, vector<7x128xf32>, vector<32x128xf32> -> vector<32x128xf32>
    %175 = vector.broadcast %162 : vector<1x128xf32> to vector<32x128xf32>
    %176 = arith.mulf %46, %175 : vector<32x128xf32>
    %177 = arith.addf %174, %176 : vector<32x128xf32>
    %178 = vector.broadcast %48 : vector<32x1xf32> to vector<32x128xf32>
    %179 = arith.addf %177, %178 : vector<32x128xf32>
    %cst_95 = arith.constant 0.000000e+00 : f32
    %180 = vector.broadcast %cst_95 : f32 to vector<32x128xf32>
    %181 = arith.maximumf %179, %180 : vector<32x128xf32>
    %182 = arith.maximumf %155, %181 : vector<32x128xf32>
    %c5_96 = arith.constant 5 : index
    %c0_97 = arith.constant 0 : index
    %c0_98 = arith.constant 0 : index
    %183 = vector.load %arg1[%c5_96, %c0_97, %c0_98] : memref<8x4x128xf32, #tpu.memory_space<vmem>>, vector<1x4x128xf32>
    %184 = vector.shape_cast %183 : vector<1x4x128xf32> to vector<4x128xf32>
    %185 = vector.extract_strided_slice %184 {offsets = [0, 0], sizes = [3, 128], strides = [1, 1]} : vector<4x128xf32> to vector<3x128xf32>
    %cst_99 = arith.constant 6.000000e+00 : f32
    %186 = vector.broadcast %cst_99 : f32 to vector<1x128xf32>
    %187 = arith.cmpf oge, %1, %186 : vector<1x128xf32>
    %188 = arith.extui %187 : vector<1x128xi1> to vector<1x128xi32>
    %189 = arith.sitofp %188 : vector<1x128xi32> to vector<1x128xf32>
    %190 = vector.extract_strided_slice %184 {offsets = [3, 0], sizes = [1, 128], strides = [1, 1]} : vector<4x128xf32> to vector<1x128xf32>
    %c0_100 = arith.constant 0 : index
    %c0_101 = arith.constant 0 : index
    %191 = vector.load %arg7[%c0_100, %c0_101] : memref<7x128xf32, #tpu.memory_space<vmem>>, vector<1x128xf32>
    tpu.vector_store %arg7[%c0_100, %c0_101], %190 {strides = array<i32>} : memref<7x128xf32, #tpu.memory_space<vmem>>, vector<1x128xf32>,
    %192 = arith.subf %185, %28 : vector<3x128xf32>
    %193 = vector.broadcast %189 : vector<1x128xf32> to vector<3x128xf32>
    %194 = arith.mulf %192, %193 : vector<3x128xf32>
    %c1_102 = arith.constant 1 : index
    %c0_103 = arith.constant 0 : index
    %195 = vector.load %arg7[%c1_102, %c0_103] : memref<7x128xf32, #tpu.memory_space<vmem>>, vector<3x128xf32>
    tpu.vector_store %arg7[%c1_102, %c0_103], %194 {strides = array<i32>} : memref<7x128xf32, #tpu.memory_space<vmem>>, vector<3x128xf32>,
    %196 = arith.subf %185, %0 : vector<3x128xf32>
    %197 = vector.broadcast %189 : vector<1x128xf32> to vector<3x128xf32>
    %198 = arith.mulf %196, %197 : vector<3x128xf32>
    %c4_104 = arith.constant 4 : index
    %c0_105 = arith.constant 0 : index
    %199 = vector.load %arg7[%c4_104, %c0_105] : memref<7x128xf32, #tpu.memory_space<vmem>>, vector<3x128xf32>
    tpu.vector_store %arg7[%c4_104, %c0_105], %198 {strides = array<i32>} : memref<7x128xf32, #tpu.memory_space<vmem>>, vector<3x128xf32>,
    %c0_106 = arith.constant 0 : index
    %c0_107 = arith.constant 0 : index
    %200 = vector.load %arg7[%c0_106, %c0_107] : memref<7x128xf32, #tpu.memory_space<vmem>>, vector<7x128xf32>
    %cst_108 = arith.constant dense<0.000000e+00> : vector<32x128xf32>
    %201 = tpu.matmul %47, %200, %cst_108 {dimension_numbers = #tpu.dot_dimension_numbers<[1], [0], [0], [1], [0, 0, 1, 1], [], []>} : vector<32x7xf32>, vector<7x128xf32>, vector<32x128xf32> -> vector<32x128xf32>
    %202 = vector.broadcast %189 : vector<1x128xf32> to vector<32x128xf32>
    %203 = arith.mulf %46, %202 : vector<32x128xf32>
    %204 = arith.addf %201, %203 : vector<32x128xf32>
    %205 = vector.broadcast %48 : vector<32x1xf32> to vector<32x128xf32>
    %206 = arith.addf %204, %205 : vector<32x128xf32>
    %cst_109 = arith.constant 0.000000e+00 : f32
    %207 = vector.broadcast %cst_109 : f32 to vector<32x128xf32>
    %208 = arith.maximumf %206, %207 : vector<32x128xf32>
    %209 = arith.maximumf %182, %208 : vector<32x128xf32>
    %c6_110 = arith.constant 6 : index
    %c0_111 = arith.constant 0 : index
    %c0_112 = arith.constant 0 : index
    %210 = vector.load %arg1[%c6_110, %c0_111, %c0_112] : memref<8x4x128xf32, #tpu.memory_space<vmem>>, vector<1x4x128xf32>
    %211 = vector.shape_cast %210 : vector<1x4x128xf32> to vector<4x128xf32>
    %212 = vector.extract_strided_slice %211 {offsets = [0, 0], sizes = [3, 128], strides = [1, 1]} : vector<4x128xf32> to vector<3x128xf32>
    %cst_113 = arith.constant 7.000000e+00 : f32
    %213 = vector.broadcast %cst_113 : f32 to vector<1x128xf32>
    %214 = arith.cmpf oge, %1, %213 : vector<1x128xf32>
    %215 = arith.extui %214 : vector<1x128xi1> to vector<1x128xi32>
    %216 = arith.sitofp %215 : vector<1x128xi32> to vector<1x128xf32>
    %217 = vector.extract_strided_slice %211 {offsets = [3, 0], sizes = [1, 128], strides = [1, 1]} : vector<4x128xf32> to vector<1x128xf32>
    %c0_114 = arith.constant 0 : index
    %c0_115 = arith.constant 0 : index
    %218 = vector.load %arg7[%c0_114, %c0_115] : memref<7x128xf32, #tpu.memory_space<vmem>>, vector<1x128xf32>
    tpu.vector_store %arg7[%c0_114, %c0_115], %217 {strides = array<i32>} : memref<7x128xf32, #tpu.memory_space<vmem>>, vector<1x128xf32>,
    %219 = arith.subf %212, %28 : vector<3x128xf32>
    %220 = vector.broadcast %216 : vector<1x128xf32> to vector<3x128xf32>
    %221 = arith.mulf %219, %220 : vector<3x128xf32>
    %c1_116 = arith.constant 1 : index
    %c0_117 = arith.constant 0 : index
    %222 = vector.load %arg7[%c1_116, %c0_117] : memref<7x128xf32, #tpu.memory_space<vmem>>, vector<3x128xf32>
    tpu.vector_store %arg7[%c1_116, %c0_117], %221 {strides = array<i32>} : memref<7x128xf32, #tpu.memory_space<vmem>>, vector<3x128xf32>,
    %223 = arith.subf %212, %0 : vector<3x128xf32>
    %224 = vector.broadcast %216 : vector<1x128xf32> to vector<3x128xf32>
    %225 = arith.mulf %223, %224 : vector<3x128xf32>
    %c4_118 = arith.constant 4 : index
    %c0_119 = arith.constant 0 : index
    %226 = vector.load %arg7[%c4_118, %c0_119] : memref<7x128xf32, #tpu.memory_space<vmem>>, vector<3x128xf32>
    tpu.vector_store %arg7[%c4_118, %c0_119], %225 {strides = array<i32>} : memref<7x128xf32, #tpu.memory_space<vmem>>, vector<3x128xf32>,
    %c0_120 = arith.constant 0 : index
    %c0_121 = arith.constant 0 : index
    %227 = vector.load %arg7[%c0_120, %c0_121] : memref<7x128xf32, #tpu.memory_space<vmem>>, vector<7x128xf32>
    %cst_122 = arith.constant dense<0.000000e+00> : vector<32x128xf32>
    %228 = tpu.matmul %47, %227, %cst_122 {dimension_numbers = #tpu.dot_dimension_numbers<[1], [0], [0], [1], [0, 0, 1, 1], [], []>} : vector<32x7xf32>, vector<7x128xf32>, vector<32x128xf32> -> vector<32x128xf32>
    %229 = vector.broadcast %216 : vector<1x128xf32> to vector<32x128xf32>
    %230 = arith.mulf %46, %229 : vector<32x128xf32>
    %231 = arith.addf %228, %230 : vector<32x128xf32>
    %232 = vector.broadcast %48 : vector<32x1xf32> to vector<32x128xf32>
    %233 = arith.addf %231, %232 : vector<32x128xf32>
    %cst_123 = arith.constant 0.000000e+00 : f32
    %234 = vector.broadcast %cst_123 : f32 to vector<32x128xf32>
    %235 = arith.maximumf %233, %234 : vector<32x128xf32>
    %236 = arith.maximumf %209, %235 : vector<32x128xf32>
    %c7_124 = arith.constant 7 : index
    %c0_125 = arith.constant 0 : index
    %c0_126 = arith.constant 0 : index
    %237 = vector.load %arg1[%c7_124, %c0_125, %c0_126] : memref<8x4x128xf32, #tpu.memory_space<vmem>>, vector<1x4x128xf32>
    %238 = vector.shape_cast %237 : vector<1x4x128xf32> to vector<4x128xf32>
    %239 = vector.extract_strided_slice %238 {offsets = [0, 0], sizes = [3, 128], strides = [1, 1]} : vector<4x128xf32> to vector<3x128xf32>
    %cst_127 = arith.constant 8.000000e+00 : f32
    %240 = vector.broadcast %cst_127 : f32 to vector<1x128xf32>
    %241 = arith.cmpf oge, %1, %240 : vector<1x128xf32>
    %242 = arith.extui %241 : vector<1x128xi1> to vector<1x128xi32>
    %243 = arith.sitofp %242 : vector<1x128xi32> to vector<1x128xf32>
    %244 = vector.extract_strided_slice %238 {offsets = [3, 0], sizes = [1, 128], strides = [1, 1]} : vector<4x128xf32> to vector<1x128xf32>
    %c0_128 = arith.constant 0 : index
    %c0_129 = arith.constant 0 : index
    %245 = vector.load %arg7[%c0_128, %c0_129] : memref<7x128xf32, #tpu.memory_space<vmem>>, vector<1x128xf32>
    tpu.vector_store %arg7[%c0_128, %c0_129], %244 {strides = array<i32>} : memref<7x128xf32, #tpu.memory_space<vmem>>, vector<1x128xf32>,
    %246 = arith.subf %239, %28 : vector<3x128xf32>
    %247 = vector.broadcast %243 : vector<1x128xf32> to vector<3x128xf32>
    %248 = arith.mulf %246, %247 : vector<3x128xf32>
    %c1_130 = arith.constant 1 : index
    %c0_131 = arith.constant 0 : index
    %249 = vector.load %arg7[%c1_130, %c0_131] : memref<7x128xf32, #tpu.memory_space<vmem>>, vector<3x128xf32>
    tpu.vector_store %arg7[%c1_130, %c0_131], %248 {strides = array<i32>} : memref<7x128xf32, #tpu.memory_space<vmem>>, vector<3x128xf32>,
    %250 = arith.subf %239, %0 : vector<3x128xf32>
    %251 = vector.broadcast %243 : vector<1x128xf32> to vector<3x128xf32>
    %252 = arith.mulf %250, %251 : vector<3x128xf32>
    %c4_132 = arith.constant 4 : index
    %c0_133 = arith.constant 0 : index
    %253 = vector.load %arg7[%c4_132, %c0_133] : memref<7x128xf32, #tpu.memory_space<vmem>>, vector<3x128xf32>
    tpu.vector_store %arg7[%c4_132, %c0_133], %252 {strides = array<i32>} : memref<7x128xf32, #tpu.memory_space<vmem>>, vector<3x128xf32>,
    %c0_134 = arith.constant 0 : index
    %c0_135 = arith.constant 0 : index
    %254 = vector.load %arg7[%c0_134, %c0_135] : memref<7x128xf32, #tpu.memory_space<vmem>>, vector<7x128xf32>
    %cst_136 = arith.constant dense<0.000000e+00> : vector<32x128xf32>
    %255 = tpu.matmul %47, %254, %cst_136 {dimension_numbers = #tpu.dot_dimension_numbers<[1], [0], [0], [1], [0, 0, 1, 1], [], []>} : vector<32x7xf32>, vector<7x128xf32>, vector<32x128xf32> -> vector<32x128xf32>
    %256 = vector.broadcast %243 : vector<1x128xf32> to vector<32x128xf32>
    %257 = arith.mulf %46, %256 : vector<32x128xf32>
    %258 = arith.addf %255, %257 : vector<32x128xf32>
    %259 = vector.broadcast %48 : vector<32x1xf32> to vector<32x128xf32>
    %260 = arith.addf %258, %259 : vector<32x128xf32>
    %cst_137 = arith.constant 0.000000e+00 : f32
    %261 = vector.broadcast %cst_137 : f32 to vector<32x128xf32>
    %262 = arith.maximumf %260, %261 : vector<32x128xf32>
    %263 = arith.maximumf %236, %262 : vector<32x128xf32>
    %c0_138 = arith.constant 0 : index
    %c0_139 = arith.constant 0 : index
    %264 = vector.load %arg6[%c0_138, %c0_139] : memref<32x128xf32, #tpu.memory_space<vmem>>, vector<32x128xf32>
    tpu.vector_store %arg6[%c0_138, %c0_139], %263 {strides = array<i32>} : memref<32x128xf32, #tpu.memory_space<vmem>>, vector<32x128xf32>,
    return
  }
  func.func @transform_0(%arg0: i32) -> (i32, i32, i32) {
    %c0_i32 = arith.constant 0 : i32
    %c0_i32_0 = arith.constant 0 : i32
    %c0_i32_1 = arith.constant 0 : i32
    return %c0_i32, %c0_i32_0, %arg0 : i32, i32, i32
  }
  func.func @transform_1(%arg0: i32) -> (i32, i32) {
    %c0_i32 = arith.constant 0 : i32
    %c0_i32_0 = arith.constant 0 : i32
    return %c0_i32, %arg0 : i32, i32
  }
  func.func @transform_2(%arg0: i32) -> (i32, i32) {
    %c0_i32 = arith.constant 0 : i32
    %c0_i32_0 = arith.constant 0 : i32
    %c0_i32_1 = arith.constant 0 : i32
    return %c0_i32, %c0_i32_0 : i32, i32
  }
  func.func @transform_3(%arg0: i32) -> (i32, i32) {
    %c0_i32 = arith.constant 0 : i32
    %c0_i32_0 = arith.constant 0 : i32
    %c0_i32_1 = arith.constant 0 : i32
    return %c0_i32, %c0_i32_0 : i32, i32
  }
  func.func @transform_4(%arg0: i32) -> (i32, i32) {
    %c0_i32 = arith.constant 0 : i32
    %c0_i32_0 = arith.constant 0 : i32
    %c0_i32_1 = arith.constant 0 : i32
    return %c0_i32, %c0_i32_0 : i32, i32
  }
  func.func @transform_5(%arg0: i32) -> (i32, i32) {
    %c0_i32 = arith.constant 0 : i32
    %c0_i32_0 = arith.constant 0 : i32
    return %c0_i32, %arg0 : i32, i32
  }
}

</mosaic_0001>

<llo_original>
// kernel: tpu_custom_call.1
$region0: #{tpu_custom_call.1}
  #allocation0 [shape = 'u32[]', space=smem, size = 0x4, offset = 0x4, fixed_abs, tag = 'smem constant byte address 0x4 - core index']
  #allocation1 [shape = 'u32[72,128]{1,0:T(1,128)}', space=vmem, size = 0x9000, scoped, tag = 'internal scratch']
  #allocation2 [shape = 'f32[7,128]{1,0:T(8,128)}', space=vmem, size = 0x1000, scoped, tag = 'scratch operand']
  %s0 = inlined_call_operand.hbm [shape: f32[8,4,512], index: 0, kind: input, shape index: {}]
  %s1 = inlined_call_operand.vmem [shape: f32[4,512], index: 1, kind: input, shape index: {}]
  %s2 = inlined_call_operand.vmem [shape: f32[32,7], index: 2, kind: input, shape index: {}]
  %s3 = inlined_call_operand.vmem [shape: f32[32,3], index: 3, kind: input, shape index: {}]
  %s4 = inlined_call_operand.vmem [shape: f32[32,1], index: 4, kind: input, shape index: {}]
  %s5 = inlined_call_operand.hbm [shape: f32[32,512], index: 5, kind: output, shape index: {}]
  %s6 = sld [smem:[#allocation0]]
  $region57: #{tpu_custom_call.1} parent=0
    _
  %s8 = ssub.s32 1, %s6
  %s9 = scalar_select 0, %s8, %s6
  $region1: #{tpu_custom_call.1} parent=0
    #allocation3 [shape = 'u8[32768]{0}', space=vmem, size = 0x8000, scoped, tag = 'input window, operand 0']
    #allocation4 [shape = 's32[2]{0}', space=sflag, size = 0x8, scoped, tag = 'scoped memory for tpu_custom_call.1']
    #allocation5 [shape = 's32[2]{0}', space=sflag, size = 0x8, scoped, tag = 'scoped memory for tpu_custom_call.1']
    #allocation6 [shape = 'u8[32768]{0}', space=vmem, size = 0x8000, scoped, tag = 'output window, operand 0']
    %10 = vsyncpa [#allocation4], 0
    %s11 = scalar_lea.sflag [#allocation4], 1
    %12 = vsyncpa %s11, 0
    %13 = vsyncpa [#allocation5], 0
    %s14 = scalar_lea.sflag [#allocation5], 1
    %15 = vsyncpa %s14, 0
    loop: start=0, step=1, limit=6
    $region2: #{tpu_custom_call.1} parent=1 // loop_pre_header
      _
    $region3: #{tpu_custom_call.1} parent=1 // loop_header
      %s17 = sphi 0, %s21
      %p18 = scmp.ge.s32.totalorder %s17, 6
      %s27 = sphi 0, %s29
      %s30 = sphi 0, %s27
      %s31 = sphi 0, %s30
      %s47 = sphi 0, %s31
      %s53 = sphi 0, %s55
      %s56 = sphi 0, %s53
      %s57 = sphi 0, %s56
      %s73 = sphi 0, %s57
      %s77 = sphi 0, %s77
      %s79 = sphi 0, %s77
      %s80 = sphi 0, %s79
      %s94 = sphi 0, %s80
      %s98 = sphi 0, %s98
      %s100 = sphi 0, %s98
      %s101 = sphi 0, %s100
      %s115 = sphi 0, %s101
      %s119 = sphi 0, %s119
      %s121 = sphi 0, %s119
      %s122 = sphi 0, %s121
      %s136 = sphi 0, %s122
      %s142 = sphi 0, %s144
      %s145 = sphi 0, %s142
      %s146 = sphi 0, %s145
      %s162 = sphi 0, %s146
    $region4: #{tpu_custom_call.1} parent=1 // loop_header_branch
      %20 = sbr.rel (%p18) target = $region8
    $region5: #{tpu_custom_call.1} parent=1 // loop_body
      %s22 = ssub.s32 %s17, 1
      %s23 = ssub.s32 %s17, 2
      %s24 = sadd.s32 %s17, 1
      %s25 = ssub.s32 %s17, %s24
      %p26 = scmp.eq.s32.totalorder %s25, 0
      %s28 = sadd.s32 %s27, 1
      %s29 = scalar_select %p26, %s27, %s28
      %p32 = pneg %p26
      %p33 = scmp.eq.s32.totalorder %s17, 3
      %p34 = por %p32, %p33
      %p35 = scmp.ne.s32.totalorder %s27, %s30
      %p36 = scmp.eq.s32.totalorder %s17, 0
      %p37 = por %p35, %p36
      %p38 = scmp.ne.s32.totalorder %s27, %s30
      %p39 = scmp.eq.s32.totalorder %s22, 3
      %p40 = por %p38, %p39
      %p41 = scmp.ne.s32.totalorder %s30, %s31
      %p42 = scmp.eq.s32.totalorder %s22, 0
      %p43 = por %p41, %p42
      %p44 = scmp.ne.s32.totalorder %s30, %s31
      %p45 = scmp.eq.s32.totalorder %s23, 3
      %p46 = por %p44, %p45
      %p48 = scmp.ne.s32.totalorder %s31, %s47
      %p49 = scmp.eq.s32.totalorder %s23, 0
      %p50 = por %p48, %p49
      %s51 = ssub.s32 %s17, %s24
      %p52 = scmp.eq.s32.totalorder %s51, 0
      %s54 = sadd.s32 %s53, 1
      %s55 = scalar_select %p52, %s53, %s54
      %p58 = pneg %p52
      %p59 = scmp.eq.s32.totalorder %s17, 3
      %p60 = por %p58, %p59
      %p61 = scmp.ne.s32.totalorder %s53, %s56
      %p62 = scmp.eq.s32.totalorder %s17, 0
      %p63 = por %p61, %p62
      %p64 = scmp.ne.s32.totalorder %s53, %s56
      %p65 = scmp.eq.s32.totalorder %s22, 3
      %p66 = por %p64, %p65
      %p67 = scmp.ne.s32.totalorder %s56, %s57
      %p68 = scmp.eq.s32.totalorder %s22, 0
      %p69 = por %p67, %p68
      %p70 = scmp.ne.s32.totalorder %s56, %s57
      %p71 = scmp.eq.s32.totalorder %s23, 3
      %p72 = por %p70, %p71
      %p74 = scmp.ne.s32.totalorder %s57, %s73
      %p75 = scmp.eq.s32.totalorder %s23, 0
      %p76 = por %p74, %p75
      %s78 = sadd.s32 %s77, 1
      %p81 = scmp.eq.s32.totalorder %s17, 3
      %p82 = scmp.ne.s32.totalorder %s77, %s79
      %p83 = scmp.eq.s32.totalorder %s17, 0
      %p84 = por %p82, %p83
      %p85 = scmp.ne.s32.totalorder %s77, %s79
      %p86 = scmp.eq.s32.totalorder %s22, 3
      %p87 = por %p85, %p86
      %p88 = scmp.ne.s32.totalorder %s79, %s80
      %p89 = scmp.eq.s32.totalorder %s22, 0
      %p90 = por %p88, %p89
      %p91 = scmp.ne.s32.totalorder %s79, %s80
      %p92 = scmp.eq.s32.totalorder %s23, 3
      %p93 = por %p91, %p92
      %p95 = scmp.ne.s32.totalorder %s80, %s94
      %p96 = scmp.eq.s32.totalorder %s23, 0
      %p97 = por %p95, %p96
      %s99 = sadd.s32 %s98, 1
      %p102 = scmp.eq.s32.totalorder %s17, 3
      %p103 = scmp.ne.s32.totalorder %s98, %s100
      %p104 = scmp.eq.s32.totalorder %s17, 0
      %p105 = por %p103, %p104
      %p106 = scmp.ne.s32.totalorder %s98, %s100
      %p107 = scmp.eq.s32.totalorder %s22, 3
      %p108 = por %p106, %p107
      %p109 = scmp.ne.s32.totalorder %s100, %s101
      %p110 = scmp.eq.s32.totalorder %s22, 0
      %p111 = por %p109, %p110
      %p112 = scmp.ne.s32.totalorder %s100, %s101
      %p113 = scmp.eq.s32.totalorder %s23, 3
      %p114 = por %p112, %p113
      %p116 = scmp.ne.s32.totalorder %s101, %s115
      %p117 = scmp.eq.s32.totalorder %s23, 0
      %p118 = por %p116, %p117
      %s120 = sadd.s32 %s119, 1
      %p123 = scmp.eq.s32.totalorder %s17, 3
      %p124 = scmp.ne.s32.totalorder %s119, %s121
      %p125 = scmp.eq.s32.totalorder %s17, 0
      %p126 = por %p124, %p125
      %p127 = scmp.ne.s32.totalorder %s119, %s121
      %p128 = scmp.eq.s32.totalorder %s22, 3
      %p129 = por %p127, %p128
      %p130 = scmp.ne.s32.totalorder %s121, %s122
      %p131 = scmp.eq.s32.totalorder %s22, 0
      %p132 = por %p130, %p131
      %p133 = scmp.ne.s32.totalorder %s121, %s122
      %p134 = scmp.eq.s32.totalorder %s23, 3
      %p135 = por %p133, %p134
      %p137 = scmp.ne.s32.totalorder %s122, %s136
      %p138 = scmp.eq.s32.totalorder %s23, 0
      %p139 = por %p137, %p138
      %s140 = ssub.s32 %s17, %s24
      %p141 = scmp.eq.s32.totalorder %s140, 0
      %s143 = sadd.s32 %s142, 1
      %s144 = scalar_select %p141, %s142, %s143
      %p147 = pneg %p141
      %p148 = scmp.eq.s32.totalorder %s17, 3
      %p149 = por %p147, %p148
      %p150 = scmp.ne.s32.totalorder %s142, %s145
      %p151 = scmp.eq.s32.totalorder %s17, 0
      %p152 = por %p150, %p151
      %p153 = scmp.ne.s32.totalorder %s142, %s145
      %p154 = scmp.eq.s32.totalorder %s22, 3
      %p155 = por %p153, %p154
      %p156 = scmp.ne.s32.totalorder %s145, %s146
      %p157 = scmp.eq.s32.totalorder %s22, 0
      %p158 = por %p156, %p157
      %p159 = scmp.ne.s32.totalorder %s145, %s146
      %p160 = scmp.eq.s32.totalorder %s23, 3
      %p161 = por %p159, %p160
      %p163 = scmp.ne.s32.totalorder %s146, %s162
      %p164 = scmp.eq.s32.totalorder %s23, 0
      %p165 = por %p163, %p164
      %p166 = scmp.le.s32.totalorder 1, %s17
      %p167 = scmp.lt.s32.totalorder %s17, 5
      %p168 = pnand %p166, %p167
      %p169 = pneg %p168
      // Predicated region
      $region9: #{tpu_custom_call.1} parent=5 // pred_check
        _
      $region10: #{tpu_custom_call.1} parent=5 // pred_check_branch
        %171 = sbr.rel (%p168) target = $region12
      $region11: #{tpu_custom_call.1} parent=5 // pred_region
        %s172 = ssub.s32 %s17, 1
        // Predicated region
        $region13: #{tpu_custom_call.1} parent=11 // pred_check
          %p173 = pneg %p90
        $region14: #{tpu_custom_call.1} parent=11 // pred_check_branch
          %175 = sbr.rel (%p173) target = $region16
        $region15: #{tpu_custom_call.1} parent=11 // pred_region
          _
        $region16: #{tpu_custom_call.1} parent=11 // pred_fallthru
          _
        // Predicated region
        $region17: #{tpu_custom_call.1} parent=11 // pred_check
          %p176 = pneg %p111
        $region18: #{tpu_custom_call.1} parent=11 // pred_check_branch
          %178 = sbr.rel (%p176) target = $region20
        $region19: #{tpu_custom_call.1} parent=11 // pred_region
          _
        $region20: #{tpu_custom_call.1} parent=11 // pred_fallthru
          _
        // Predicated region
        $region21: #{tpu_custom_call.1} parent=11 // pred_check
          %p179 = pneg %p132
        $region22: #{tpu_custom_call.1} parent=11 // pred_check_branch
          %181 = sbr.rel (%p179) target = $region24
        $region23: #{tpu_custom_call.1} parent=11 // pred_region
          _
        $region24: #{tpu_custom_call.1} parent=11 // pred_fallthru
          _
      $region12: #{tpu_custom_call.1} parent=5 // pred_fallthru
        _
      %p182 = scmp.lt.s32.totalorder %s17, 4
      // Predicated region
      $region25: #{tpu_custom_call.1} parent=5 // pred_check
        %p183 = pneg %p182
      $region26: #{tpu_custom_call.1} parent=5 // pred_check_branch
        %185 = sbr.rel (%p183) target = $region28
      $region27: #{tpu_custom_call.1} parent=5 // pred_region
        // Predicated region
        $region29: #{tpu_custom_call.1} parent=27 // pred_check
          %p186 = pneg %p37
        $region30: #{tpu_custom_call.1} parent=27 // pred_check_branch
          %188 = sbr.rel (%p186) target = $region32
        $region31: #{tpu_custom_call.1} parent=27 // pred_region
          %s189 = sand.u32 %s27, 1
          %s190 = scalar_lea.sflag [#allocation4], %s189
          %s191 = sand.u32 %s27, 1
          %s192 = smul.addr %s191, 32
          %s193 = scalar_lea.vmem [#allocation3], %s192
          %195 = vsyncadd %s190, 0
          %s196 = smul.addr %s17, 4
          %s197 = scalar_lea.hbm %s0, %s196
          %s198 = sshll.u32 %s197, 4
          %s199 = int_to_ptr.hbm [resolvable:$true] %s198
          %s200 = sshll.u32 %s193, 4
          %s201 = int_to_ptr.vmem [resolvable:$true] %s200
          %206 = dma.hbm_to_vmem [thread:$0]  %s199, 512, %s201, %s190, 256, 64, 4
        $region32: #{tpu_custom_call.1} parent=27 // pred_fallthru
          _
        // Predicated region
        $region33: #{tpu_custom_call.1} parent=27 // pred_check
          %p207 = pneg %p63
        $region34: #{tpu_custom_call.1} parent=27 // pred_check_branch
          %209 = sbr.rel (%p207) target = $region36
        $region35: #{tpu_custom_call.1} parent=27 // pred_region
          %p210 = scmp.lt.s32.totalorder %s17, 3
          %s211 = scalar_select %p210, %s17, 3
          %s212 = smul.addr %s211, 4
          %s213 = scalar_lea.vmem %s1, %s212
        $region36: #{tpu_custom_call.1} parent=27 // pred_fallthru
          _
      $region28: #{tpu_custom_call.1} parent=5 // pred_fallthru
        _
      %p214 = scmp.le.s32.totalorder 1, %s17
      %p215 = scmp.lt.s32.totalorder %s17, 5
      %p216 = pnand %p214, %p215
      %p217 = pneg %p216
      // Predicated region
      $region37: #{tpu_custom_call.1} parent=5 // pred_check
        _
      $region38: #{tpu_custom_call.1} parent=5 // pred_check_branch
        %219 = sbr.rel (%p216) target = $region40
      $region39: #{tpu_custom_call.1} parent=5 // pred_region
        %s220 = ssub.s32 %s17, 1
        %s221 = sand.u32 %s30, 1
        %s222 = scalar_lea.sflag [#allocation4], %s221
        %s223 = sand.u32 %s30, 1
        %s224 = smul.addr %s223, 32
        %s225 = scalar_lea.vmem [#allocation3], %s224
        // Predicated region
        $region41: #{tpu_custom_call.1} parent=39 // pred_check
          %p226 = pneg %p43
        $region42: #{tpu_custom_call.1} parent=39 // pred_check_branch
          %228 = sbr.rel (%p226) target = $region44
        $region43: #{tpu_custom_call.1} parent=39 // pred_region
          %230 = dma.done %s222, 512
        $region44: #{tpu_custom_call.1} parent=39 // pred_fallthru
          _
        %s231 = sand.u32 %s30, 1
        %s232 = scalar_lea.sflag [#allocation4], %s231
        %s233 = sand.u32 %s30, 1
        %s234 = smul.addr %s233, 32
        %s235 = scalar_lea.vmem [#allocation3], %s234
        %p236 = pneg %p43
        %p237 = pneg %p40
        %p238 = scmp.lt.s32.totalorder %s22, 3
        %s239 = scalar_select %p238, %s22, 3
        %s240 = smul.addr %s239, 4
        %s241 = scalar_lea.vmem %s1, %s240
        %p242 = pneg %p69
        %p243 = pneg %p66
        %p244 = pneg %p90
        %p245 = pneg %p87
        %p246 = pneg %p111
        %p247 = pneg %p108
        %p248 = pneg %p132
        %p249 = pneg %p129
        %p250 = pneg %p158
        %p251 = pneg %p155
        %s252 = sand.u32 %s145, 1
        %s253 = scalar_lea.sflag [#allocation5], %s252
        %s254 = sand.u32 %s145, 1
        %s255 = smul.addr %s254, 32
        %s256 = scalar_lea.vmem [#allocation6], %s255
        %p257 = scmp.lt.s32.totalorder %s22, 3
        %s258 = scalar_select %p257, %s22, 3
        %s259 = smul.addr %s258, 4
        %s260 = scalar_lea.vmem %s1, %s259
        %v261 = vld [vmem:[%s260] sm:$0x7]
        %v262 = vld [vmem:[%s260 + $0x3] sm:$0x1]
        %v263 = vld [vmem:[%s225] sm:$0x7]
        %s264 = scalar_lea.vmem %s225, 4 [#allocation3]
        %v265 = vld [vmem:[%s264] sm:$0x7]
        %v266 = vadd.f32 %v263, %v265
        %s267 = scalar_lea.vmem %s225, 8 [#allocation3]
        %v268 = vld [vmem:[%s267] sm:$0x7]
        %v269 = vadd.f32 %v266, %v268
        %s270 = scalar_lea.vmem %s225, 12 [#allocation3]
        %v271 = vld [vmem:[%s270] sm:$0x7]
        %v272 = vadd.f32 %v269, %v271
        %s273 = scalar_lea.vmem %s225, 16 [#allocation3]
        %v274 = vld [vmem:[%s273] sm:$0x7]
        %v275 = vadd.f32 %v272, %v274
        %s276 = scalar_lea.vmem %s225, 20 [#allocation3]
        %v277 = vld [vmem:[%s276] sm:$0x7]
        %v278 = vadd.f32 %v275, %v277
        %s279 = scalar_lea.vmem %s225, 24 [#allocation3]
        %v280 = vld [vmem:[%s279] sm:$0x7]
        %v281 = vadd.f32 %v278, %v280
        %s282 = scalar_lea.vmem %s225, 28 [#allocation3]
        %v283 = vld [vmem:[%s282] sm:$0x7]
        %v284 = vadd.f32 %v281, %v283
        %v285 = vmax.f32 %v262, 1.0
        %v286 = vperm.slane %v285, 0
        %v287 = vrcp.pop %v286
        %v288 = vmul.f32 %v286, %v287
        %v289 = vsub.f32 1.0, %v288
        %v290 = vmul.f32 %v287, %v289
        %v291 = vadd.f32 %v287, %v290
        %vm292 = vweird.f32 %v286
        %vm293 = vweird.f32 %v287
        %vm294 = vmor %vm292, %vm293
        %v295 = vsel %vm294, %v287, %v291
        %v296 = vand.u32 2147483647, %v286
        %vm297 = vcmp.eq.f32.partialorder %v296, 8.507059e+37
        %v298 = vand.u32 %v286, 2147483648
        %v299 = vor.u32 1.1754944e-38, %v298
        %v300 = vsel %vm297, %v299, %v295
        %v301 = vmul.f32 %v284, %v300
        %v302 = vld [vmem:[%s3] sm:$0xff]
        %v303 = vld [vmem:[%s3 + $0x8] sm:$0xff]
        %v304 = vld [vmem:[%s3 + $0x10] sm:$0xff]
        %v305 = vld [vmem:[%s3 + $0x18] sm:$0xff]
        %307 = vset.pattern.permute.xlu0 0
        %308 = vperm.xlu0 %307, %v302
        %v309 = vpop.permute.xlu0 %308
        %312 = vset.pattern.permute.xlu0 0
        %313 = vperm.xlu0 %312, %v303
        %v314 = vpop.permute.xlu0 %313
        %317 = vset.pattern.permute.xlu0 0
        %318 = vperm.xlu0 %317, %v304
        %v319 = vpop.permute.xlu0 %318
        %322 = vset.pattern.permute.xlu0 0
        %323 = vperm.xlu0 %322, %v305
        %v324 = vpop.permute.xlu0 %323
        %v326 = vperm.slane %v261, 0
        %v327 = vmul.f32 %v309, %v326
        %v328 = vmul.f32 %v314, %v326
        %v329 = vmul.f32 %v319, %v326
        %v330 = vmul.f32 %v324, %v326
        %331 = vset.pattern.permute.xlu0 1
        %332 = vperm.xlu0 %331, %v302
        %v333 = vpop.permute.xlu0 %332
        %335 = vset.pattern.permute.xlu0 1
        %336 = vperm.xlu0 %335, %v303
        %v337 = vpop.permute.xlu0 %336
        %339 = vset.pattern.permute.xlu0 1
        %340 = vperm.xlu0 %339, %v304
        %v341 = vpop.permute.xlu0 %340
        %343 = vset.pattern.permute.xlu0 1
        %344 = vperm.xlu0 %343, %v305
        %v345 = vpop.permute.xlu0 %344
        %v347 = vperm.slane %v261, 1
        %v348 = vmul.f32 %v333, %v347
        %v349 = vmul.f32 %v337, %v347
        %v350 = vmul.f32 %v341, %v347
        %v351 = vmul.f32 %v345, %v347
        %v352 = vadd.f32 %v327, %v348
        %v353 = vadd.f32 %v328, %v349
        %v354 = vadd.f32 %v329, %v350
        %v355 = vadd.f32 %v330, %v351
        %356 = vset.pattern.permute.xlu0 2
        %357 = vperm.xlu0 %356, %v302
        %v358 = vpop.permute.xlu0 %357
        %360 = vset.pattern.permute.xlu0 2
        %361 = vperm.xlu0 %360, %v303
        %v362 = vpop.permute.xlu0 %361
        %364 = vset.pattern.permute.xlu0 2
        %365 = vperm.xlu0 %364, %v304
        %v366 = vpop.permute.xlu0 %365
        %368 = vset.pattern.permute.xlu0 2
        %369 = vperm.xlu0 %368, %v305
        %v370 = vpop.permute.xlu0 %369
        %v372 = vperm.slane %v261, 2
        %v373 = vmul.f32 %v358, %v372
        %v374 = vmul.f32 %v362, %v372
        %v375 = vmul.f32 %v366, %v372
        %v376 = vmul.f32 %v370, %v372
        %v377 = vadd.f32 %v352, %v373
        %v378 = vadd.f32 %v353, %v374
        %v379 = vadd.f32 %v354, %v375
        %v380 = vadd.f32 %v355, %v376
        %v381 = vld [vmem:[%s2] sm:$0xff]
        %v382 = vld [vmem:[%s2 + $0x8] sm:$0xff]
        %v383 = vld [vmem:[%s2 + $0x10] sm:$0xff]
        %v384 = vld [vmem:[%s2 + $0x18] sm:$0xff]
        %v385 = vld [vmem:[%s4] sm:$0xff]
        %v386 = vld [vmem:[%s4 + $0x8] sm:$0xff]
        %v387 = vld [vmem:[%s4 + $0x10] sm:$0xff]
        %v388 = vld [vmem:[%s4 + $0x18] sm:$0xff]
        %v389 = vld [vmem:[%s225] sm:$0xf]
        %vm390 = vcmp.ge.f32.partialorder %v262, 1.0
        %v391 = vsel %vm390, 1, 0
        %v392 = vcvt.s32.f32 %v391
        %393 = vst [vmem:[#allocation2 - $0x3] sm:$0x8] %v389
        %v394 = vsub.f32 %v389, %v301
        %v395 = vperm.slane %v392, 0
        %v396 = vmul.f32 %v394, %v395
        %397 = vst [vmem:[#allocation2 + $0x1] sm:$0x7] %v396
        %v398 = vsub.f32 %v389, %v261
        %v399 = vmul.f32 %v398, %v395
        %400 = vst [vmem:[#allocation2 + $0x4] sm:$0x7] %v399
        %v401 = vld [vmem:[#allocation2] sm:$0x7f]
        %v402 = vmul.f32 %v377, %v395
        %v403 = vmul.f32 %v378, %v395
        %v404 = vmul.f32 %v379, %v395
        %v405 = vmul.f32 %v380, %v395
        %vm406 = vcmask 56320
        %v408 = vsel %vm406, %v381, 0
        %v411 = vsel %vm406, %v382, 0
        %v414 = vsel %vm406, %v383, 0
        %v417 = vsel %vm406, %v384, 0
        %vm419 = vcmask 1046528
        %v421 = vsel %vm419, %v401, 0
        %423 = vmatpush.msra.mxu0 0.0
        %424 = vmatpush.msra.mxu0 0.0
        %425 = vmatpush.msra.mxu0 0.0
        %426 = vmatpush.msra.mxu0 0.0
        %427 = vmatpush.msra.mxu0 0.0
        %428 = vmatpush.msra.mxu0 0.0
        %429 = vmatpush.msra.mxu0 0.0
        %430 = vmatpush.msra.mxu0 0.0
        %431 = vmatpush.msra.mxu0 0.0
        %432 = vmatpush.msra.mxu0 0.0
        %433 = vmatpush.msra.mxu0 0.0
        %434 = vmatpush.msra.mxu0 0.0
        %435 = vmatpush.msra.mxu0 0.0
        %436 = vmatpush.msra.mxu0 0.0
        %437 = vmatpush.msra.mxu0 0.0
        %438 = vmatpush.msra.mxu0 %v421
        %439 = vmatmul.f32.gmra.mxu0 %v408
        %v440 = vpop.f32.mrf.mxu0
        %v441 = vadd.f32 %v402, %v440
        %442 = vmatmul.f32.gmra.mxu0 %v411
        %v443 = vpop.f32.mrf.mxu0
        %v444 = vadd.f32 %v403, %v443
        %445 = vmatmul.f32.gmra.mxu0 %v414
        %v446 = vpop.f32.mrf.mxu0
        %v447 = vadd.f32 %v404, %v446
        %448 = vmatmul.f32.gmra.mxu0 %v417
        %v449 = vpop.f32.mrf.mxu0
        %v450 = vadd.f32 %v405, %v449
        %451 = vdwg.mxu0
        %453 = vset.pattern.permute.xlu0 0
        %454 = vperm.xlu0 %453, %v385
        %v455 = vpop.permute.xlu0 %454
        %458 = vset.pattern.permute.xlu0 0
        %459 = vperm.xlu0 %458, %v386
        %v460 = vpop.permute.xlu0 %459
        %463 = vset.pattern.permute.xlu0 0
        %464 = vperm.xlu0 %463, %v387
        %v465 = vpop.permute.xlu0 %464
        %468 = vset.pattern.permute.xlu0 0
        %469 = vperm.xlu0 %468, %v388
        %v470 = vpop.permute.xlu0 %469
        %v472 = vadd.f32 %v441, %v455
        %v473 = vadd.f32 %v444, %v460
        %v474 = vadd.f32 %v447, %v465
        %v475 = vadd.f32 %v450, %v470
        %v476 = vmax.f32 %v472, 0.0
        %v477 = vmax.f32 %v473, 0.0
        %v478 = vmax.f32 %v474, 0.0
        %v479 = vmax.f32 %v475, 0.0
        %v480 = vld [vmem:[%s264] sm:$0xf]
        %vm481 = vcmp.ge.f32.partialorder %v262, 2.0
        %v482 = vsel %vm481, 1, 0
        %v483 = vcvt.s32.f32 %v482
        %484 = vst [vmem:[#allocation2 - $0x3] sm:$0x8] %v480
        %v485 = vsub.f32 %v480, %v301
        %v486 = vperm.slane %v483, 0
        %v487 = vmul.f32 %v485, %v486
        %488 = vst [vmem:[#allocation2 + $0x1] sm:$0x7] %v487
        %v489 = vsub.f32 %v480, %v261
        %v490 = vmul.f32 %v489, %v486
        %491 = vst [vmem:[#allocation2 + $0x4] sm:$0x7] %v490
        %v492 = vld [vmem:[#allocation2] sm:$0x7f]
        %v493 = vmul.f32 %v377, %v486
        %v494 = vmul.f32 %v378, %v486
        %v495 = vmul.f32 %v379, %v486
        %v496 = vmul.f32 %v380, %v486
        %v498 = vsel %vm419, %v492, 0
        %500 = vmatpush.msra.mxu0 0.0
        %501 = vmatpush.msra.mxu0 0.0
        %502 = vmatpush.msra.mxu0 0.0
        %503 = vmatpush.msra.mxu0 0.0
        %504 = vmatpush.msra.mxu0 0.0
        %505 = vmatpush.msra.mxu0 0.0
        %506 = vmatpush.msra.mxu0 0.0
        %507 = vmatpush.msra.mxu0 0.0
        %508 = vmatpush.msra.mxu0 0.0
        %509 = vmatpush.msra.mxu0 0.0
        %510 = vmatpush.msra.mxu0 0.0
        %511 = vmatpush.msra.mxu0 0.0
        %512 = vmatpush.msra.mxu0 0.0
        %513 = vmatpush.msra.mxu0 0.0
        %514 = vmatpush.msra.mxu0 0.0
        %515 = vmatpush.msra.mxu0 %v498
        %516 = vmatmul.f32.gmra.mxu0 %v408
        %v517 = vpop.f32.mrf.mxu0
        %v518 = vadd.f32 %v493, %v517
        %519 = vmatmul.f32.gmra.mxu0 %v411
        %v520 = vpop.f32.mrf.mxu0
        %v521 = vadd.f32 %v494, %v520
        %522 = vmatmul.f32.gmra.mxu0 %v414
        %v523 = vpop.f32.mrf.mxu0
        %v524 = vadd.f32 %v495, %v523
        %525 = vmatmul.f32.gmra.mxu0 %v417
        %v526 = vpop.f32.mrf.mxu0
        %v527 = vadd.f32 %v496, %v526
        %528 = vdwg.mxu0
        %v529 = vadd.f32 %v518, %v455
        %v530 = vadd.f32 %v521, %v460
        %v531 = vadd.f32 %v524, %v465
        %v532 = vadd.f32 %v527, %v470
        %v533 = vmax.f32 %v529, 0.0
        %v534 = vmax.f32 %v530, 0.0
        %v535 = vmax.f32 %v531, 0.0
        %v536 = vmax.f32 %v532, 0.0
        %v537 = vmax.f32 %v476, %v533
        %v538 = vmax.f32 %v477, %v534
        %v539 = vmax.f32 %v478, %v535
        %v540 = vmax.f32 %v479, %v536
        %v541 = vld [vmem:[%s267] sm:$0xf]
        %vm542 = vcmp.ge.f32.partialorder %v262, 3.0
        %v543 = vsel %vm542, 1, 0
        %v544 = vcvt.s32.f32 %v543
        %545 = vst [vmem:[#allocation2 - $0x3] sm:$0x8] %v541
        %v546 = vsub.f32 %v541, %v301
        %v547 = vperm.slane %v544, 0
        %v548 = vmul.f32 %v546, %v547
        %549 = vst [vmem:[#allocation2 + $0x1] sm:$0x7] %v548
        %v550 = vsub.f32 %v541, %v261
        %v551 = vmul.f32 %v550, %v547
        %552 = vst [vmem:[#allocation2 + $0x4] sm:$0x7] %v551
        %v553 = vld [vmem:[#allocation2] sm:$0x7f]
        %v554 = vmul.f32 %v377, %v547
        %v555 = vmul.f32 %v378, %v547
        %v556 = vmul.f32 %v379, %v547
        %v557 = vmul.f32 %v380, %v547
        %v559 = vsel %vm419, %v553, 0
        %561 = vmatpush.msra.mxu0 0.0
        %562 = vmatpush.msra.mxu0 0.0
        %563 = vmatpush.msra.mxu0 0.0
        %564 = vmatpush.msra.mxu0 0.0
        %565 = vmatpush.msra.mxu0 0.0
        %566 = vmatpush.msra.mxu0 0.0
        %567 = vmatpush.msra.mxu0 0.0
        %568 = vmatpush.msra.mxu0 0.0
        %569 = vmatpush.msra.mxu0 0.0
        %570 = vmatpush.msra.mxu0 0.0
        %571 = vmatpush.msra.mxu0 0.0
        %572 = vmatpush.msra.mxu0 0.0
        %573 = vmatpush.msra.mxu0 0.0
        %574 = vmatpush.msra.mxu0 0.0
        %575 = vmatpush.msra.mxu0 0.0
        %576 = vmatpush.msra.mxu0 %v559
        %577 = vmatmul.f32.gmra.mxu0 %v408
        %v578 = vpop.f32.mrf.mxu0
        %v579 = vadd.f32 %v554, %v578
        %580 = vmatmul.f32.gmra.mxu0 %v411
        %v581 = vpop.f32.mrf.mxu0
        %v582 = vadd.f32 %v555, %v581
        %583 = vmatmul.f32.gmra.mxu0 %v414
        %v584 = vpop.f32.mrf.mxu0
        %v585 = vadd.f32 %v556, %v584
        %586 = vmatmul.f32.gmra.mxu0 %v417
        %v587 = vpop.f32.mrf.mxu0
        %v588 = vadd.f32 %v557, %v587
        %589 = vdwg.mxu0
        %v590 = vadd.f32 %v579, %v455
        %v591 = vadd.f32 %v582, %v460
        %v592 = vadd.f32 %v585, %v465
        %v593 = vadd.f32 %v588, %v470
        %v594 = vmax.f32 %v590, 0.0
        %v595 = vmax.f32 %v591, 0.0
        %v596 = vmax.f32 %v592, 0.0
        %v597 = vmax.f32 %v593, 0.0
        %v598 = vmax.f32 %v537, %v594
        %v599 = vmax.f32 %v538, %v595
        %v600 = vmax.f32 %v539, %v596
        %v601 = vmax.f32 %v540, %v597
        %v602 = vld [vmem:[%s270] sm:$0xf]
        %vm603 = vcmp.ge.f32.partialorder %v262, 4.0
        %v604 = vsel %vm603, 1, 0
        %v605 = vcvt.s32.f32 %v604
        %606 = vst [vmem:[#allocation2 - $0x3] sm:$0x8] %v602
        %v607 = vsub.f32 %v602, %v301
        %v608 = vperm.slane %v605, 0
        %v609 = vmul.f32 %v607, %v608
        %610 = vst [vmem:[#allocation2 + $0x1] sm:$0x7] %v609
        %v611 = vsub.f32 %v602, %v261
        %v612 = vmul.f32 %v611, %v608
        %613 = vst [vmem:[#allocation2 + $0x4] sm:$0x7] %v612
        %v614 = vld [vmem:[#allocation2] sm:$0x7f]
        %v615 = vmul.f32 %v377, %v608
        %v616 = vmul.f32 %v378, %v608
        %v617 = vmul.f32 %v379, %v608
        %v618 = vmul.f32 %v380, %v608
        %v620 = vsel %vm419, %v614, 0
        %622 = vmatpush.msra.mxu0 0.0
        %623 = vmatpush.msra.mxu0 0.0
        %624 = vmatpush.msra.mxu0 0.0
        %625 = vmatpush.msra.mxu0 0.0
        %626 = vmatpush.msra.mxu0 0.0
        %627 = vmatpush.msra.mxu0 0.0
        %628 = vmatpush.msra.mxu0 0.0
        %629 = vmatpush.msra.mxu0 0.0
        %630 = vmatpush.msra.mxu0 0.0
        %631 = vmatpush.msra.mxu0 0.0
        %632 = vmatpush.msra.mxu0 0.0
        %633 = vmatpush.msra.mxu0 0.0
        %634 = vmatpush.msra.mxu0 0.0
        %635 = vmatpush.msra.mxu0 0.0
        %636 = vmatpush.msra.mxu0 0.0
        %637 = vmatpush.msra.mxu0 %v620
        %638 = vmatmul.f32.gmra.mxu0 %v408
        %v639 = vpop.f32.mrf.mxu0
        %v640 = vadd.f32 %v615, %v639
        %641 = vmatmul.f32.gmra.mxu0 %v411
        %v642 = vpop.f32.mrf.mxu0
        %v643 = vadd.f32 %v616, %v642
        %644 = vmatmul.f32.gmra.mxu0 %v414
        %v645 = vpop.f32.mrf.mxu0
        %v646 = vadd.f32 %v617, %v645
        %647 = vmatmul.f32.gmra.mxu0 %v417
        %v648 = vpop.f32.mrf.mxu0
        %v649 = vadd.f32 %v618, %v648
        %650 = vdwg.mxu0
        %v651 = vadd.f32 %v640, %v455
        %v652 = vadd.f32 %v643, %v460
        %v653 = vadd.f32 %v646, %v465
        %v654 = vadd.f32 %v649, %v470
        %v655 = vmax.f32 %v651, 0.0
        %v656 = vmax.f32 %v652, 0.0
        %v657 = vmax.f32 %v653, 0.0
        %v658 = vmax.f32 %v654, 0.0
        %v659 = vmax.f32 %v598, %v655
        %v660 = vmax.f32 %v599, %v656
        %v661 = vmax.f32 %v600, %v657
        %v662 = vmax.f32 %v601, %v658
        %v663 = vld [vmem:[%s273] sm:$0xf]
        %vm664 = vcmp.ge.f32.partialorder %v262, 5.0
        %v665 = vsel %vm664, 1, 0
        %v666 = vcvt.s32.f32 %v665
        %667 = vst [vmem:[#allocation2 - $0x3] sm:$0x8] %v663
        %v668 = vsub.f32 %v663, %v301
        %v669 = vperm.slane %v666, 0
        %v670 = vmul.f32 %v668, %v669
        %671 = vst [vmem:[#allocation2 + $0x1] sm:$0x7] %v670
        %v672 = vsub.f32 %v663, %v261
        %v673 = vmul.f32 %v672, %v669
        %674 = vst [vmem:[#allocation2 + $0x4] sm:$0x7] %v673
        %v675 = vld [vmem:[#allocation2] sm:$0x7f]
        %v676 = vmul.f32 %v377, %v669
        %v677 = vmul.f32 %v378, %v669
        %v678 = vmul.f32 %v379, %v669
        %v679 = vmul.f32 %v380, %v669
        %v681 = vsel %vm419, %v675, 0
        %683 = vmatpush.msra.mxu0 0.0
        %684 = vmatpush.msra.mxu0 0.0
        %685 = vmatpush.msra.mxu0 0.0
        %686 = vmatpush.msra.mxu0 0.0
        %687 = vmatpush.msra.mxu0 0.0
        %688 = vmatpush.msra.mxu0 0.0
        %689 = vmatpush.msra.mxu0 0.0
        %690 = vmatpush.msra.mxu0 0.0
        %691 = vmatpush.msra.mxu0 0.0
        %692 = vmatpush.msra.mxu0 0.0
        %693 = vmatpush.msra.mxu0 0.0
        %694 = vmatpush.msra.mxu0 0.0
        %695 = vmatpush.msra.mxu0 0.0
        %696 = vmatpush.msra.mxu0 0.0
        %697 = vmatpush.msra.mxu0 0.0
        %698 = vmatpush.msra.mxu0 %v681
        %699 = vmatmul.f32.gmra.mxu0 %v408
        %v700 = vpop.f32.mrf.mxu0
        %v701 = vadd.f32 %v676, %v700
        %702 = vmatmul.f32.gmra.mxu0 %v411
        %v703 = vpop.f32.mrf.mxu0
        %v704 = vadd.f32 %v677, %v703
        %705 = vmatmul.f32.gmra.mxu0 %v414
        %v706 = vpop.f32.mrf.mxu0
        %v707 = vadd.f32 %v678, %v706
        %708 = vmatmul.f32.gmra.mxu0 %v417
        %v709 = vpop.f32.mrf.mxu0
        %v710 = vadd.f32 %v679, %v709
        %711 = vdwg.mxu0
        %v712 = vadd.f32 %v701, %v455
        %v713 = vadd.f32 %v704, %v460
        %v714 = vadd.f32 %v707, %v465
        %v715 = vadd.f32 %v710, %v470
        %v716 = vmax.f32 %v712, 0.0
        %v717 = vmax.f32 %v713, 0.0
        %v718 = vmax.f32 %v714, 0.0
        %v719 = vmax.f32 %v715, 0.0
        %v720 = vmax.f32 %v659, %v716
        %v721 = vmax.f32 %v660, %v717
        %v722 = vmax.f32 %v661, %v718
        %v723 = vmax.f32 %v662, %v719
        %v724 = vld [vmem:[%s276] sm:$0xf]
        %vm725 = vcmp.ge.f32.partialorder %v262, 6.0
        %v726 = vsel %vm725, 1, 0
        %v727 = vcvt.s32.f32 %v726
        %728 = vst [vmem:[#allocation2 - $0x3] sm:$0x8] %v724
        %v729 = vsub.f32 %v724, %v301
        %v730 = vperm.slane %v727, 0
        %v731 = vmul.f32 %v729, %v730
        %732 = vst [vmem:[#allocation2 + $0x1] sm:$0x7] %v731
        %v733 = vsub.f32 %v724, %v261
        %v734 = vmul.f32 %v733, %v730
        %735 = vst [vmem:[#allocation2 + $0x4] sm:$0x7] %v734
        %v736 = vld [vmem:[#allocation2] sm:$0x7f]
        %v737 = vmul.f32 %v377, %v730
        %v738 = vmul.f32 %v378, %v730
        %v739 = vmul.f32 %v379, %v730
        %v740 = vmul.f32 %v380, %v730
        %v742 = vsel %vm419, %v736, 0
        %744 = vmatpush.msra.mxu0 0.0
        %745 = vmatpush.msra.mxu0 0.0
        %746 = vmatpush.msra.mxu0 0.0
        %747 = vmatpush.msra.mxu0 0.0
        %748 = vmatpush.msra.mxu0 0.0
        %749 = vmatpush.msra.mxu0 0.0
        %750 = vmatpush.msra.mxu0 0.0
        %751 = vmatpush.msra.mxu0 0.0
        %752 = vmatpush.msra.mxu0 0.0
        %753 = vmatpush.msra.mxu0 0.0
        %754 = vmatpush.msra.mxu0 0.0
        %755 = vmatpush.msra.mxu0 0.0
        %756 = vmatpush.msra.mxu0 0.0
        %757 = vmatpush.msra.mxu0 0.0
        %758 = vmatpush.msra.mxu0 0.0
        %759 = vmatpush.msra.mxu0 %v742
        %760 = vmatmul.f32.gmra.mxu0 %v408
        %v761 = vpop.f32.mrf.mxu0
        %v762 = vadd.f32 %v737, %v761
        %763 = vmatmul.f32.gmra.mxu0 %v411
        %v764 = vpop.f32.mrf.mxu0
        %v765 = vadd.f32 %v738, %v764
        %766 = vmatmul.f32.gmra.mxu0 %v414
        %v767 = vpop.f32.mrf.mxu0
        %v768 = vadd.f32 %v739, %v767
        %769 = vmatmul.f32.gmra.mxu0 %v417
        %v770 = vpop.f32.mrf.mxu0
        %v771 = vadd.f32 %v740, %v770
        %772 = vdwg.mxu0
        %v773 = vadd.f32 %v762, %v455
        %v774 = vadd.f32 %v765, %v460
        %v775 = vadd.f32 %v768, %v465
        %v776 = vadd.f32 %v771, %v470
        %v777 = vmax.f32 %v773, 0.0
        %v778 = vmax.f32 %v774, 0.0
        %v779 = vmax.f32 %v775, 0.0
        %v780 = vmax.f32 %v776, 0.0
        %v781 = vmax.f32 %v720, %v777
        %v782 = vmax.f32 %v721, %v778
        %v783 = vmax.f32 %v722, %v779
        %v784 = vmax.f32 %v723, %v780
        %v785 = vld [vmem:[%s279] sm:$0xf]
        %vm786 = vcmp.ge.f32.partialorder %v262, 7.0
        %v787 = vsel %vm786, 1, 0
        %v788 = vcvt.s32.f32 %v787
        %789 = vst [vmem:[#allocation2 - $0x3] sm:$0x8] %v785
        %v790 = vsub.f32 %v785, %v301
        %v791 = vperm.slane %v788, 0
        %v792 = vmul.f32 %v790, %v791
        %793 = vst [vmem:[#allocation2 + $0x1] sm:$0x7] %v792
        %v794 = vsub.f32 %v785, %v261
        %v795 = vmul.f32 %v794, %v791
        %796 = vst [vmem:[#allocation2 + $0x4] sm:$0x7] %v795
        %v797 = vld [vmem:[#allocation2] sm:$0x7f]
        %v798 = vmul.f32 %v377, %v791
        %v799 = vmul.f32 %v378, %v791
        %v800 = vmul.f32 %v379, %v791
        %v801 = vmul.f32 %v380, %v791
        %v803 = vsel %vm419, %v797, 0
        %805 = vmatpush.msra.mxu0 0.0
        %806 = vmatpush.msra.mxu0 0.0
        %807 = vmatpush.msra.mxu0 0.0
        %808 = vmatpush.msra.mxu0 0.0
        %809 = vmatpush.msra.mxu0 0.0
        %810 = vmatpush.msra.mxu0 0.0
        %811 = vmatpush.msra.mxu0 0.0
        %812 = vmatpush.msra.mxu0 0.0
        %813 = vmatpush.msra.mxu0 0.0
        %814 = vmatpush.msra.mxu0 0.0
        %815 = vmatpush.msra.mxu0 0.0
        %816 = vmatpush.msra.mxu0 0.0
        %817 = vmatpush.msra.mxu0 0.0
        %818 = vmatpush.msra.mxu0 0.0
        %819 = vmatpush.msra.mxu0 0.0
        %820 = vmatpush.msra.mxu0 %v803
        %821 = vmatmul.f32.gmra.mxu0 %v408
        %v822 = vpop.f32.mrf.mxu0
        %v823 = vadd.f32 %v798, %v822
        %824 = vmatmul.f32.gmra.mxu0 %v411
        %v825 = vpop.f32.mrf.mxu0
        %v826 = vadd.f32 %v799, %v825
        %827 = vmatmul.f32.gmra.mxu0 %v414
        %v828 = vpop.f32.mrf.mxu0
        %v829 = vadd.f32 %v800, %v828
        %830 = vmatmul.f32.gmra.mxu0 %v417
        %v831 = vpop.f32.mrf.mxu0
        %v832 = vadd.f32 %v801, %v831
        %833 = vdwg.mxu0
        %v834 = vadd.f32 %v823, %v455
        %v835 = vadd.f32 %v826, %v460
        %v836 = vadd.f32 %v829, %v465
        %v837 = vadd.f32 %v832, %v470
        %v838 = vmax.f32 %v834, 0.0
        %v839 = vmax.f32 %v835, 0.0
        %v840 = vmax.f32 %v836, 0.0
        %v841 = vmax.f32 %v837, 0.0
        %v842 = vmax.f32 %v781, %v838
        %v843 = vmax.f32 %v782, %v839
        %v844 = vmax.f32 %v783, %v840
        %v845 = vmax.f32 %v784, %v841
        %v846 = vld [vmem:[%s282] sm:$0xf]
        %vm847 = vcmp.ge.f32.partialorder %v262, 8.0
        %v848 = vsel %vm847, 1, 0
        %v849 = vcvt.s32.f32 %v848
        %850 = vst [vmem:[#allocation2 - $0x3] sm:$0x8] %v846
        %v851 = vsub.f32 %v846, %v301
        %v852 = vperm.slane %v849, 0
        %v853 = vmul.f32 %v851, %v852
        %854 = vst [vmem:[#allocation2 + $0x1] sm:$0x7] %v853
        %v855 = vsub.f32 %v846, %v261
        %v856 = vmul.f32 %v855, %v852
        %857 = vst [vmem:[#allocation2 + $0x4] sm:$0x7] %v856
        %v858 = vld [vmem:[#allocation2] sm:$0x7f]
        %v859 = vmul.f32 %v377, %v852
        %v860 = vmul.f32 %v378, %v852
        %v861 = vmul.f32 %v379, %v852
        %v862 = vmul.f32 %v380, %v852
        %v864 = vsel %vm419, %v858, 0
        %866 = vmatpush.msra.mxu0 0.0
        %867 = vmatpush.msra.mxu0 0.0
        %868 = vmatpush.msra.mxu0 0.0
        %869 = vmatpush.msra.mxu0 0.0
        %870 = vmatpush.msra.mxu0 0.0
        %871 = vmatpush.msra.mxu0 0.0
        %872 = vmatpush.msra.mxu0 0.0
        %873 = vmatpush.msra.mxu0 0.0
        %874 = vmatpush.msra.mxu0 0.0
        %875 = vmatpush.msra.mxu0 0.0
        %876 = vmatpush.msra.mxu0 0.0
        %877 = vmatpush.msra.mxu0 0.0
        %878 = vmatpush.msra.mxu0 0.0
        %879 = vmatpush.msra.mxu0 0.0
        %880 = vmatpush.msra.mxu0 0.0
        %881 = vmatpush.msra.mxu0 %v864
        %882 = vmatmul.f32.gmra.mxu0 %v408
        %v883 = vpop.f32.mrf.mxu0
        %v884 = vadd.f32 %v859, %v883
        %885 = vmatmul.f32.gmra.mxu0 %v411
        %v886 = vpop.f32.mrf.mxu0
        %v887 = vadd.f32 %v860, %v886
        %888 = vmatmul.f32.gmra.mxu0 %v414
        %v889 = vpop.f32.mrf.mxu0
        %v890 = vadd.f32 %v861, %v889
        %891 = vmatmul.f32.gmra.mxu0 %v417
        %v892 = vpop.f32.mrf.mxu0
        %v893 = vadd.f32 %v862, %v892
        %894 = vdwg.mxu0
        %v895 = vadd.f32 %v884, %v455
        %v896 = vadd.f32 %v887, %v460
        %v897 = vadd.f32 %v890, %v465
        %v898 = vadd.f32 %v893, %v470
        %v899 = vmax.f32 %v895, 0.0
        %v900 = vmax.f32 %v896, 0.0
        %v901 = vmax.f32 %v897, 0.0
        %v902 = vmax.f32 %v898, 0.0
        %v903 = vmax.f32 %v842, %v899
        %v904 = vmax.f32 %v843, %v900
        %v905 = vmax.f32 %v844, %v901
        %v906 = vmax.f32 %v845, %v902
        %907 = vst [vmem:[%s256] sm:$0xff] %v903
        %908 = vst [vmem:[%s256 + $0x8] sm:$0xff] %v904
        %909 = vst [vmem:[%s256 + $0x10] sm:$0xff] %v905
        %910 = vst [vmem:[%s256 + $0x18] sm:$0xff] %v906
        %s911 = sand.u32 %s145, 1
        %s912 = scalar_lea.sflag [#allocation5], %s911
        %s913 = sand.u32 %s145, 1
        %s914 = smul.addr %s913, 32
        %s915 = scalar_lea.vmem [#allocation6], %s914
        // Predicated region
        $region45: #{tpu_custom_call.1} parent=39 // pred_check
          %p916 = pneg %p155
        $region46: #{tpu_custom_call.1} parent=39 // pred_check_branch
          %918 = sbr.rel (%p916) target = $region48
        $region47: #{tpu_custom_call.1} parent=39 // pred_region
          %920 = vsyncadd %s912, 0
          %s921 = smul.addr %s22, 8
          %s922 = scalar_lea.hbm %s5, %s921
          %s923 = sshll.u32 %s915, 4
          %s924 = int_to_ptr.vmem [resolvable:$true] %s923
          %s925 = sshll.u32 %s922, 4
          %s926 = int_to_ptr.hbm [resolvable:$true] %s925
          %931 = dma.vmem_to_hbm [thread:$0]  %s924, 512, %s926, %s912, 128, 512, 8
        $region48: #{tpu_custom_call.1} parent=39 // pred_fallthru
          _
      $region40: #{tpu_custom_call.1} parent=5 // pred_fallthru
        _
      %p932 = scmp.le.s32.totalorder 2, %s17
      // Predicated region
      $region49: #{tpu_custom_call.1} parent=5 // pred_check
        %p933 = pneg %p932
      $region50: #{tpu_custom_call.1} parent=5 // pred_check_branch
        %935 = sbr.rel (%p933) target = $region52
      $region51: #{tpu_custom_call.1} parent=5 // pred_region
        %s936 = ssub.s32 %s17, 2
        // Predicated region
        $region53: #{tpu_custom_call.1} parent=51 // pred_check
          %p937 = pneg %p161
        $region54: #{tpu_custom_call.1} parent=51 // pred_check_branch
          %939 = sbr.rel (%p937) target = $region56
        $region55: #{tpu_custom_call.1} parent=51 // pred_region
          %s940 = sand.u32 %s146, 1
          %s941 = scalar_lea.sflag [#allocation5], %s940
          %s942 = sand.u32 %s146, 1
          %s943 = smul.addr %s942, 32
          %s944 = scalar_lea.vmem [#allocation6], %s943
          %946 = dma.done %s941, 512
        $region56: #{tpu_custom_call.1} parent=51 // pred_fallthru
          _
      $region52: #{tpu_custom_call.1} parent=5 // pred_fallthru
        _
    $region6: #{tpu_custom_call.1} parent=1 // loop_footer
      %s21 = sadd.s32 1, %s17
    $region7: #{tpu_custom_call.1} parent=1 // loop_footer_branch
      %16 = sbr.rel target = $region3
    $region8: #{tpu_custom_call.1} parent=1 // loop_exit
      _
    %947 = vsyncpa [#allocation4], 1
    %s948 = scalar_lea.sflag [#allocation4], 1
    %949 = vsyncpa %s948, 1
    %950 = vsyncpa [#allocation5], 1
    %s951 = scalar_lea.sflag [#allocation5], 1
    %952 = vsyncpa %s951, 1

</llo_original>
